<compile_context>
chip_gen: v6e
topology: v6e:2x2x1
jax: 0.10.0
libtpu: 0.0.40
codegen_flags: <defaults>
</compile_context>

<pallas_src>
import jax
import jax.numpy as jnp
from jax.experimental import pallas as pl
from jax.experimental.pallas import tpu as pltpu

BANDS = 4      # "bands" channel count of alpha / S / alpha_new
DSPEC = 8      # spectral dim of Y / rows of Db
L = 128        # sequence length (pixels)
N = 2          # batch


def _relu(x):
    return jnp.maximum(x, 0.0)


def repeat_a_block_kernel(
    # activations / data
    alpha_ref, y_ref, db_t_ref,
    # Net_a2S weights (bf16) and biases (f32)
    w_in_ref, b_in_ref,
    w_64_128_ref, b_64_128_ref,
    w_128_256_ref, b_128_256_ref,
    w_256_128_ref, b_256_128_ref,
    w_256_64_a_ref, w_256_64_b_ref, b_256_64_ref,
    w_128_64_a_ref, w_128_64_b_ref, b_128_64_ref,
    w_out_ref, b_out_ref,
    # Net_S2a parameters
    myweight_ref, mu_ref,
    # outputs
    alpha_new_ref, s_ref,
):
    x = alpha_ref[...].astype(jnp.bfloat16)     # (bands, N*L)
    y = y_ref[...].astype(jnp.bfloat16)         # (D,     N*L)

    def mm(w_ref, v):
        # bf16 x bf16 MXU matmul, f32 accumulation
        return jnp.dot(w_ref[...], v, preferred_element_type=jnp.float32)

    def conv1x1_relu(w_ref, b_ref, v):
        # 1x1 Conv1d + ReLU == channel-dim matmul + bias broadcast over lanes
        return _relu(mm(w_ref, v) + b_ref[...]).astype(jnp.bfloat16)

    # ---- Net_S2a data term (independent of conv chain; compute early) ----
    mu = mu_ref[0]
    data_term = mm(db_t_ref, y)                                   # (bands, N*L) f32

    # ---- Net_a2S: 1x1-conv chain; concats replaced by split-weight sums ----
    x_64   = conv1x1_relu(w_in_ref,      b_in_ref,      x)        # (64,  N*L)
    x_128  = conv1x1_relu(w_64_128_ref,  b_64_128_ref,  x_64)     # (128, N*L)
    x_256  = conv1x1_relu(w_128_256_ref, b_128_256_ref, x_128)    # (256, N*L)
    xl_128 = conv1x1_relu(w_256_128_ref, b_256_128_ref, x_256)    # (128, N*L)
    # conv_256_64(cat(x_128, xl_128)) == W[:, :128]@x_128 + W[:, 128:]@xl_128
    yl_64 = _relu(mm(w_256_64_a_ref, x_128) + mm(w_256_64_b_ref, xl_128)
                  + b_256_64_ref[...]).astype(jnp.bfloat16)       # (64, N*L)
    # conv_128_64(cat(x_64, yl_64))  == W[:, :64]@x_64 + W[:, 64:]@yl_64
    y_64 = _relu(mm(w_128_64_a_ref, x_64) + mm(w_128_64_b_ref, yl_64)
                 + b_128_64_ref[...]).astype(jnp.bfloat16)        # (64, N*L)
    s = _relu(mm(w_out_ref, y_64) + b_out_ref[...])               # (bands, N*L) f32

    # ---- Net_S2a: a = relu(myweight @ (mu*S + Db^T @ Y)) ----
    temp = mu * s + data_term
    a = _relu(jnp.dot(myweight_ref[...], temp.astype(jnp.bfloat16),
                      preferred_element_type=jnp.float32))

    alpha_new_ref[...] = a
    s_ref[...] = s


def init_params(key, bands):
    """Deterministic synthetic parameters (module __init__ defines the shapes).

    Conv1d(kernel_size=1) weights (out, in, 1) are stored squeezed as (out, in);
    biases are stored as (out, 1) so they broadcast over the lane axis.
    """
    dims = [
        ("in",      bands, 64),
        ("64_128",  64,    128),
        ("128_256", 128,   256),
        ("256_128", 256,   128),
        ("256_64",  256,   64),
        ("128_64",  128,   64),
        ("out",     64,    bands),
    ]
    params = {}
    keys = jax.random.split(key, 2 * len(dims) + 1)
    for i, (name, cin, cout) in enumerate(dims):
        params[f"w_{name}"] = (
            0.1 * jax.random.normal(keys[2 * i], (cout, cin), jnp.float32))
        params[f"b_{name}"] = (
            0.1 * jax.random.normal(keys[2 * i + 1], (cout, 1), jnp.float32))
    # TODO(synk): weight_init() solves a pinv system from (root, Y0) data; here
    # myweight is synthetic (same shape: bands x bands x 1, stored squeezed).
    params["myweight"] = (
        0.1 * jax.random.normal(keys[-1], (bands, bands), jnp.float32))
    params["mu"] = jnp.array([1.0], jnp.float32)   # nn.Parameter([1.])
    return params


def repeat_a_block(alpha, Y, Db, params):
    n, bands, length = alpha.shape
    d = Y.shape[1]
    nl = n * length

    # Fold batch into the lane axis: (N, C, L) -> (C, N*L).
    # All convs are kernel_size=1, so the math is identical per pixel.
    alpha2d = jnp.transpose(alpha, (1, 0, 2)).reshape(bands, nl)
    y2d = jnp.transpose(Y, (1, 0, 2)).reshape(d, nl)
    db_t = Db.T.astype(jnp.bfloat16)                      # (bands, D), pre-transposed

    bf16 = lambda a: a.astype(jnp.bfloat16)
    w_256_64 = params["w_256_64"]
    w_128_64 = params["w_128_64"]
    weight_args = [
        bf16(params["w_in"]),      params["b_in"],
        bf16(params["w_64_128"]),  params["b_64_128"],
        bf16(params["w_128_256"]), params["b_128_256"],
        bf16(params["w_256_128"]), params["b_256_128"],
        bf16(w_256_64[:, :128]), bf16(w_256_64[:, 128:]), params["b_256_64"],
        bf16(w_128_64[:, :64]),  bf16(w_128_64[:, 64:]),  params["b_128_64"],
        bf16(params["w_out"]),     params["b_out"],
        bf16(params["myweight"]),
    ]

    vmem = lambda: pl.BlockSpec(memory_space=pltpu.MemorySpace.VMEM)
    smem = lambda: pl.BlockSpec(memory_space=pltpu.MemorySpace.SMEM)

    in_specs = [vmem() for _ in range(3 + len(weight_args))] + [smem()]
    out_specs = [vmem(), vmem()]

    out_shape = (
        jax.ShapeDtypeStruct((bands, nl), jnp.float32),   # alpha_new (folded)
        jax.ShapeDtypeStruct((bands, nl), jnp.float32),   # S (folded)
    )

    fn = pl.pallas_call(
        repeat_a_block_kernel,
        out_shape=out_shape,
        in_specs=in_specs,
        out_specs=out_specs,
    )
    a2d, s2d = fn(alpha2d, y2d, db_t, *weight_args, params["mu"])

    # Unfold batch: (C, N*L) -> (N, C, L)
    alpha_new = jnp.transpose(a2d.reshape(bands, n, length), (1, 0, 2))
    S = jnp.transpose(s2d.reshape(bands, n, length), (1, 0, 2))
    return alpha_new, S


def reference(alpha, Y, Db, params):
    """Pure-JAX f32 reference mirroring the PyTorch forward (for verification)."""
    hp = jax.lax.Precision.HIGHEST

    def conv(nm, v):
        w, b = params[f"w_{nm}"], params[f"b_{nm}"]
        return jnp.maximum(
            jnp.einsum("oc,ncl->nol", w, v, precision=hp) + b[None], 0.0)

    x_64 = conv("in", alpha)
    x_128 = conv("64_128", x_64)
    x_256 = conv("128_256", x_128)
    xl_128 = conv("256_128", x_256)
    y_256 = jnp.concatenate((x_128, xl_128), axis=-2)
    yl_64 = conv("256_64", y_256)
    y_128 = jnp.concatenate((x_64, yl_64), axis=-2)
    y_64 = conv("128_64", y_128)
    S = conv("out", y_64)

    temp = params["mu"][0] * S + jnp.einsum("dc,ndl->ncl", Db, Y, precision=hp)
    a = jnp.maximum(
        jnp.einsum("oc,ncl->nol", params["myweight"], temp, precision=hp), 0.0)
    return a, S


if __name__ == "__main__":
    key = jax.random.PRNGKey(0)
    k_alpha, k_y, k_db, k_params = jax.random.split(key, 4)

    alpha = jax.random.normal(k_alpha, (N, BANDS, L), jnp.float32)
    Y = jax.random.normal(k_y, (N, DSPEC, L), jnp.float32)
    Db = jax.random.normal(k_db, (DSPEC, BANDS), jnp.float32)
    params = init_params(k_params, BANDS)

    alpha_new, S = repeat_a_block(alpha, Y, Db, params)
    jax.block_until_ready((alpha_new, S))

    a_ref, s_ref = reference(alpha, Y, Db, params)
    assert alpha_new.shape == (N, BANDS, L) and S.shape == (N, BANDS, L)
    # bf16 weights/activations in the kernel vs f32-HIGHEST reference -> loosened tol.
    assert jnp.allclose(alpha_new, a_ref, atol=5e-2, rtol=5e-2)
    assert jnp.allclose(S, s_ref, atol=5e-2, rtol=5e-2)

    print("KERNEL_OK")
</pallas_src>

<mosaic_0001>
module attributes {stable_mosaic.version = 11 : i64} {
  func.func @repeat_a_block_kernel(%arg0: memref<4x256xf32, #tpu.memory_space<vmem>>, %arg1: memref<8x256xf32, #tpu.memory_space<vmem>>, %arg2: memref<4x8xbf16, #tpu.memory_space<vmem>>, %arg3: memref<64x4xbf16, #tpu.memory_space<vmem>>, %arg4: memref<64x1xf32, #tpu.memory_space<vmem>>, %arg5: memref<128x64xbf16, #tpu.memory_space<vmem>>, %arg6: memref<128x1xf32, #tpu.memory_space<vmem>>, %arg7: memref<256x128xbf16, #tpu.memory_space<vmem>>, %arg8: memref<256x1xf32, #tpu.memory_space<vmem>>, %arg9: memref<128x256xbf16, #tpu.memory_space<vmem>>, %arg10: memref<128x1xf32, #tpu.memory_space<vmem>>, %arg11: memref<64x128xbf16, #tpu.memory_space<vmem>>, %arg12: memref<64x128xbf16, #tpu.memory_space<vmem>>, %arg13: memref<64x1xf32, #tpu.memory_space<vmem>>, %arg14: memref<64x64xbf16, #tpu.memory_space<vmem>>, %arg15: memref<64x64xbf16, #tpu.memory_space<vmem>>, %arg16: memref<64x1xf32, #tpu.memory_space<vmem>>, %arg17: memref<4x64xbf16, #tpu.memory_space<vmem>>, %arg18: memref<4x1xf32, #tpu.memory_space<vmem>>, %arg19: memref<4x4xbf16, #tpu.memory_space<vmem>>, %arg20: memref<1xf32, #tpu.memory_space<smem>>, %arg21: memref<4x256xf32, #tpu.memory_space<vmem>>, %arg22: memref<4x256xf32, #tpu.memory_space<vmem>>) attributes {dimension_semantics = [], scalar_prefetch = 0 : i64, scratch_operands = 0 : i64, tpu.core_type = #tpu.core_type<tc>} {
    %c0 = arith.constant 0 : index
    %c0_0 = arith.constant 0 : index
    %0 = vector.load %arg0[%c0, %c0_0] : memref<4x256xf32, #tpu.memory_space<vmem>>, vector<4x256xf32>
    %1 = arith.truncf %0 : vector<4x256xf32> to vector<4x256xbf16>
    %c0_1 = arith.constant 0 : index
    %c0_2 = arith.constant 0 : index
    %2 = vector.load %arg1[%c0_1, %c0_2] : memref<8x256xf32, #tpu.memory_space<vmem>>, vector<8x256xf32>
    %3 = arith.truncf %2 : vector<8x256xf32> to vector<8x256xbf16>
    %c0_3 = arith.constant 0 : index
    %4 = memref.load %arg20[%c0_3] : memref<1xf32, #tpu.memory_space<smem>>
    %c0_4 = arith.constant 0 : index
    %c0_5 = arith.constant 0 : index
    %5 = vector.load %arg2[%c0_4, %c0_5] : memref<4x8xbf16, #tpu.memory_space<vmem>>, vector<4x8xbf16>
    %cst = arith.constant dense<0.000000e+00> : vector<4x256xf32>
    %6 = tpu.matmul %5, %3, %cst {dimension_numbers = #tpu.dot_dimension_numbers<[1], [0], [0], [1], [0, 0, 1, 1], [], []>} : vector<4x8xbf16>, vector<8x256xbf16>, vector<4x256xf32> -> vector<4x256xf32>
    %c0_6 = arith.constant 0 : index
    %c0_7 = arith.constant 0 : index
    %7 = vector.load %arg3[%c0_6, %c0_7] : memref<64x4xbf16, #tpu.memory_space<vmem>>, vector<64x4xbf16>
    %cst_8 = arith.constant dense<0.000000e+00> : vector<64x256xf32>
    %8 = tpu.matmul %7, %1, %cst_8 {dimension_numbers = #tpu.dot_dimension_numbers<[1], [0], [0], [1], [0, 0, 1, 1], [], []>} : vector<64x4xbf16>, vector<4x256xbf16>, vector<64x256xf32> -> vector<64x256xf32>
    %c0_9 = arith.constant 0 : index
    %c0_10 = arith.constant 0 : index
    %9 = vector.load %arg4[%c0_9, %c0_10] : memref<64x1xf32, #tpu.memory_space<vmem>>, vector<64x1xf32>
    %10 = vector.broadcast %9 : vector<64x1xf32> to vector<64x256xf32>
    %11 = arith.addf %8, %10 : vector<64x256xf32>
    %cst_11 = arith.constant 0.000000e+00 : f32
    %12 = vector.broadcast %cst_11 : f32 to vector<64x256xf32>
    %13 = arith.maximumf %11, %12 : vector<64x256xf32>
    %14 = arith.truncf %13 : vector<64x256xf32> to vector<64x256xbf16>
    %c0_12 = arith.constant 0 : index
    %c0_13 = arith.constant 0 : index
    %15 = vector.load %arg5[%c0_12, %c0_13] : memref<128x64xbf16, #tpu.memory_space<vmem>>, vector<128x64xbf16>
    %cst_14 = arith.constant dense<0.000000e+00> : vector<128x256xf32>
    %16 = tpu.matmul %15, %14, %cst_14 {dimension_numbers = #tpu.dot_dimension_numbers<[1], [0], [0], [1], [0, 0, 1, 1], [], []>} : vector<128x64xbf16>, vector<64x256xbf16>, vector<128x256xf32> -> vector<128x256xf32>
    %c0_15 = arith.constant 0 : index
    %c0_16 = arith.constant 0 : index
    %17 = vector.load %arg6[%c0_15, %c0_16] : memref<128x1xf32, #tpu.memory_space<vmem>>, vector<128x1xf32>
    %18 = vector.broadcast %17 : vector<128x1xf32> to vector<128x256xf32>
    %19 = arith.addf %16, %18 : vector<128x256xf32>
    %cst_17 = arith.constant 0.000000e+00 : f32
    %20 = vector.broadcast %cst_17 : f32 to vector<128x256xf32>
    %21 = arith.maximumf %19, %20 : vector<128x256xf32>
    %22 = arith.truncf %21 : vector<128x256xf32> to vector<128x256xbf16>
    %c0_18 = arith.constant 0 : index
    %c0_19 = arith.constant 0 : index
    %23 = vector.load %arg7[%c0_18, %c0_19] : memref<256x128xbf16, #tpu.memory_space<vmem>>, vector<256x128xbf16>
    %cst_20 = arith.constant dense<0.000000e+00> : vector<256x256xf32>
    %24 = tpu.matmul %23, %22, %cst_20 {dimension_numbers = #tpu.dot_dimension_numbers<[1], [0], [0], [1], [0, 0, 1, 1], [], []>} : vector<256x128xbf16>, vector<128x256xbf16>, vector<256x256xf32> -> vector<256x256xf32>
    %c0_21 = arith.constant 0 : index
    %c0_22 = arith.constant 0 : index
    %25 = vector.load %arg8[%c0_21, %c0_22] : memref<256x1xf32, #tpu.memory_space<vmem>>, vector<256x1xf32>
    %26 = vector.broadcast %25 : vector<256x1xf32> to vector<256x256xf32>
    %27 = arith.addf %24, %26 : vector<256x256xf32>
    %cst_23 = arith.constant 0.000000e+00 : f32
    %28 = vector.broadcast %cst_23 : f32 to vector<256x256xf32>
    %29 = arith.maximumf %27, %28 : vector<256x256xf32>
    %30 = arith.truncf %29 : vector<256x256xf32> to vector<256x256xbf16>
    %c0_24 = arith.constant 0 : index
    %c0_25 = arith.constant 0 : index
    %31 = vector.load %arg9[%c0_24, %c0_25] : memref<128x256xbf16, #tpu.memory_space<vmem>>, vector<128x256xbf16>
    %cst_26 = arith.constant dense<0.000000e+00> : vector<128x256xf32>
    %32 = tpu.matmul %31, %30, %cst_26 {dimension_numbers = #tpu.dot_dimension_numbers<[1], [0], [0], [1], [0, 0, 1, 1], [], []>} : vector<128x256xbf16>, vector<256x256xbf16>, vector<128x256xf32> -> vector<128x256xf32>
    %c0_27 = arith.constant 0 : index
    %c0_28 = arith.constant 0 : index
    %33 = vector.load %arg10[%c0_27, %c0_28] : memref<128x1xf32, #tpu.memory_space<vmem>>, vector<128x1xf32>
    %34 = vector.broadcast %33 : vector<128x1xf32> to vector<128x256xf32>
    %35 = arith.addf %32, %34 : vector<128x256xf32>
    %cst_29 = arith.constant 0.000000e+00 : f32
    %36 = vector.broadcast %cst_29 : f32 to vector<128x256xf32>
    %37 = arith.maximumf %35, %36 : vector<128x256xf32>
    %38 = arith.truncf %37 : vector<128x256xf32> to vector<128x256xbf16>
    %c0_30 = arith.constant 0 : index
    %c0_31 = arith.constant 0 : index
    %39 = vector.load %arg11[%c0_30, %c0_31] : memref<64x128xbf16, #tpu.memory_space<vmem>>, vector<64x128xbf16>
    %cst_32 = arith.constant dense<0.000000e+00> : vector<64x256xf32>
    %40 = tpu.matmul %39, %22, %cst_32 {dimension_numbers = #tpu.dot_dimension_numbers<[1], [0], [0], [1], [0, 0, 1, 1], [], []>} : vector<64x128xbf16>, vector<128x256xbf16>, vector<64x256xf32> -> vector<64x256xf32>
    %c0_33 = arith.constant 0 : index
    %c0_34 = arith.constant 0 : index
    %41 = vector.load %arg12[%c0_33, %c0_34] : memref<64x128xbf16, #tpu.memory_space<vmem>>, vector<64x128xbf16>
    %cst_35 = arith.constant dense<0.000000e+00> : vector<64x256xf32>
    %42 = tpu.matmul %41, %38, %cst_35 {dimension_numbers = #tpu.dot_dimension_numbers<[1], [0], [0], [1], [0, 0, 1, 1], [], []>} : vector<64x128xbf16>, vector<128x256xbf16>, vector<64x256xf32> -> vector<64x256xf32>
    %43 = arith.addf %40, %42 : vector<64x256xf32>
    %c0_36 = arith.constant 0 : index
    %c0_37 = arith.constant 0 : index
    %44 = vector.load %arg13[%c0_36, %c0_37] : memref<64x1xf32, #tpu.memory_space<vmem>>, vector<64x1xf32>
    %45 = vector.broadcast %44 : vector<64x1xf32> to vector<64x256xf32>
    %46 = arith.addf %43, %45 : vector<64x256xf32>
    %cst_38 = arith.constant 0.000000e+00 : f32
    %47 = vector.broadcast %cst_38 : f32 to vector<64x256xf32>
    %48 = arith.maximumf %46, %47 : vector<64x256xf32>
    %49 = arith.truncf %48 : vector<64x256xf32> to vector<64x256xbf16>
    %c0_39 = arith.constant 0 : index
    %c0_40 = arith.constant 0 : index
    %50 = vector.load %arg14[%c0_39, %c0_40] : memref<64x64xbf16, #tpu.memory_space<vmem>>, vector<64x64xbf16>
    %cst_41 = arith.constant dense<0.000000e+00> : vector<64x256xf32>
    %51 = tpu.matmul %50, %14, %cst_41 {dimension_numbers = #tpu.dot_dimension_numbers<[1], [0], [0], [1], [0, 0, 1, 1], [], []>} : vector<64x64xbf16>, vector<64x256xbf16>, vector<64x256xf32> -> vector<64x256xf32>
    %c0_42 = arith.constant 0 : index
    %c0_43 = arith.constant 0 : index
    %52 = vector.load %arg15[%c0_42, %c0_43] : memref<64x64xbf16, #tpu.memory_space<vmem>>, vector<64x64xbf16>
    %cst_44 = arith.constant dense<0.000000e+00> : vector<64x256xf32>
    %53 = tpu.matmul %52, %49, %cst_44 {dimension_numbers = #tpu.dot_dimension_numbers<[1], [0], [0], [1], [0, 0, 1, 1], [], []>} : vector<64x64xbf16>, vector<64x256xbf16>, vector<64x256xf32> -> vector<64x256xf32>
    %54 = arith.addf %51, %53 : vector<64x256xf32>
    %c0_45 = arith.constant 0 : index
    %c0_46 = arith.constant 0 : index
    %55 = vector.load %arg16[%c0_45, %c0_46] : memref<64x1xf32, #tpu.memory_space<vmem>>, vector<64x1xf32>
    %56 = vector.broadcast %55 : vector<64x1xf32> to vector<64x256xf32>
    %57 = arith.addf %54, %56 : vector<64x256xf32>
    %cst_47 = arith.constant 0.000000e+00 : f32
    %58 = vector.broadcast %cst_47 : f32 to vector<64x256xf32>
    %59 = arith.maximumf %57, %58 : vector<64x256xf32>
    %60 = arith.truncf %59 : vector<64x256xf32> to vector<64x256xbf16>
    %c0_48 = arith.constant 0 : index
    %c0_49 = arith.constant 0 : index
    %61 = vector.load %arg17[%c0_48, %c0_49] : memref<4x64xbf16, #tpu.memory_space<vmem>>, vector<4x64xbf16>
    %cst_50 = arith.constant dense<0.000000e+00> : vector<4x256xf32>
    %62 = tpu.matmul %61, %60, %cst_50 {dimension_numbers = #tpu.dot_dimension_numbers<[1], [0], [0], [1], [0, 0, 1, 1], [], []>} : vector<4x64xbf16>, vector<64x256xbf16>, vector<4x256xf32> -> vector<4x256xf32>
    %c0_51 = arith.constant 0 : index
    %c0_52 = arith.constant 0 : index
    %63 = vector.load %arg18[%c0_51, %c0_52] : memref<4x1xf32, #tpu.memory_space<vmem>>, vector<4x1xf32>
    %64 = vector.broadcast %63 : vector<4x1xf32> to vector<4x256xf32>
    %65 = arith.addf %62, %64 : vector<4x256xf32>
    %cst_53 = arith.constant 0.000000e+00 : f32
    %66 = vector.broadcast %cst_53 : f32 to vector<4x256xf32>
    %67 = arith.maximumf %65, %66 : vector<4x256xf32>
    %68 = vector.broadcast %4 : f32 to vector<4x256xf32>
    %69 = arith.mulf %68, %67 : vector<4x256xf32>
    %70 = arith.addf %69, %6 : vector<4x256xf32>
    %c0_54 = arith.constant 0 : index
    %c0_55 = arith.constant 0 : index
    %71 = vector.load %arg19[%c0_54, %c0_55] : memref<4x4xbf16, #tpu.memory_space<vmem>>, vector<4x4xbf16>
    %72 = arith.truncf %70 : vector<4x256xf32> to vector<4x256xbf16>
    %cst_56 = arith.constant dense<0.000000e+00> : vector<4x256xf32>
    %73 = tpu.matmul %71, %72, %cst_56 {dimension_numbers = #tpu.dot_dimension_numbers<[1], [0], [0], [1], [0, 0, 1, 1], [], []>} : vector<4x4xbf16>, vector<4x256xbf16>, vector<4x256xf32> -> vector<4x256xf32>
    %cst_57 = arith.constant 0.000000e+00 : f32
    %74 = vector.broadcast %cst_57 : f32 to vector<4x256xf32>
    %75 = arith.maximumf %73, %74 : vector<4x256xf32>
    %c0_58 = arith.constant 0 : index
    %c0_59 = arith.constant 0 : index
    %76 = vector.load %arg21[%c0_58, %c0_59] : memref<4x256xf32, #tpu.memory_space<vmem>>, vector<4x256xf32>
    tpu.vector_store %arg21[%c0_58, %c0_59], %75 {strides = array<i32>} : memref<4x256xf32, #tpu.memory_space<vmem>>, vector<4x256xf32>,
    %c0_60 = arith.constant 0 : index
    %c0_61 = arith.constant 0 : index
    %77 = vector.load %arg22[%c0_60, %c0_61] : memref<4x256xf32, #tpu.memory_space<vmem>>, vector<4x256xf32>
    tpu.vector_store %arg22[%c0_60, %c0_61], %67 {strides = array<i32>} : memref<4x256xf32, #tpu.memory_space<vmem>>, vector<4x256xf32>,
    return
  }
}

</mosaic_0001>

<llo_original>
// kernel: tpu_custom_call.1
$region0: #{tpu_custom_call.1}
  #allocation0 [shape = 'u32[]', space=smem, size = 0x4, offset = 0x4, fixed_abs, tag = 'smem constant byte address 0x4 - core index']
  #allocation1 [shape = 'u32[144,128]{1,0:T(1,128)}', space=vmem, size = 0x12000, scoped, tag = 'internal scratch']
  #allocation2 [shape = 'f32[1]{0:T(128)S(6)}', space=smem, size = 0x200, scoped, tag = 'scoped memory for tpu_custom_call.1']
  %s0 = inlined_call_operand.vmem [shape: f32[4,256], index: 0, kind: input, shape index: {}]
  %s1 = inlined_call_operand.vmem [shape: f32[8,256], index: 1, kind: input, shape index: {}]
  %s2 = inlined_call_operand.vmem [shape: bf16[4,8], index: 2, kind: input, shape index: {}]
  %s3 = inlined_call_operand.vmem [shape: bf16[64,4], index: 3, kind: input, shape index: {}]
  %s4 = inlined_call_operand.vmem [shape: f32[64,1], index: 4, kind: input, shape index: {}]
  %s5 = inlined_call_operand.vmem [shape: bf16[128,64], index: 5, kind: input, shape index: {}]
  %s6 = inlined_call_operand.vmem [shape: f32[128,1], index: 6, kind: input, shape index: {}]
  %s7 = inlined_call_operand.vmem [shape: bf16[256,128], index: 7, kind: input, shape index: {}]
  %s8 = inlined_call_operand.vmem [shape: f32[256,1], index: 8, kind: input, shape index: {}]
  %s9 = inlined_call_operand.vmem [shape: bf16[128,256], index: 9, kind: input, shape index: {}]
  %s10 = inlined_call_operand.vmem [shape: f32[128,1], index: 10, kind: input, shape index: {}]
  %s11 = inlined_call_operand.vmem [shape: bf16[64,128], index: 11, kind: input, shape index: {}]
  %s12 = inlined_call_operand.vmem [shape: bf16[64,128], index: 12, kind: input, shape index: {}]
  %s13 = inlined_call_operand.vmem [shape: f32[64,1], index: 13, kind: input, shape index: {}]
  %s14 = inlined_call_operand.vmem [shape: bf16[64,64], index: 14, kind: input, shape index: {}]
  %s15 = inlined_call_operand.vmem [shape: bf16[64,64], index: 15, kind: input, shape index: {}]
  %s16 = inlined_call_operand.vmem [shape: f32[64,1], index: 16, kind: input, shape index: {}]
  %s17 = inlined_call_operand.vmem [shape: bf16[4,64], index: 17, kind: input, shape index: {}]
  %s18 = inlined_call_operand.vmem [shape: f32[4,1], index: 18, kind: input, shape index: {}]
  %s19 = inlined_call_operand.vmem [shape: bf16[4,4], index: 19, kind: input, shape index: {}]
  %s20 = inlined_call_operand.<no memory space> [shape: f32[1], index: 20, kind: input, shape index: {}]
  %s21 = inlined_call_operand.hbm [shape: f32[4,256], index: 21, kind: output, shape index: {0}]
  %s22 = inlined_call_operand.hbm [shape: f32[4,256], index: 22, kind: output, shape index: {1}]
  %23 = xla_tuple %s21, %s22
  %s24 = sld [smem:[#allocation0]]
  $region102: #{tpu_custom_call.1} parent=0
    _
  %s26 = ssub.s32 1, %s24
  %s27 = scalar_select 0, %s26, %s24
  %28 = sst [smem:[#allocation2]] %s20
  $region1: #{tpu_custom_call.1} parent=0
    #allocation3 [shape = 'u8[4096]{0}', space=vmem, size = 0x1000, scoped, tag = 'output window, operand 0, single buffered']
    #allocation4 [shape = 's32[1]{0}', space=sflag, size = 0x4, scoped, tag = 'scoped memory for tpu_custom_call.1']
    #allocation5 [shape = 'u8[4096]{0}', space=vmem, size = 0x1000, scoped, tag = 'output window, operand 1, single buffered']
    #allocation6 [shape = 's32[1]{0}', space=sflag, size = 0x4, scoped, tag = 'scoped memory for tpu_custom_call.1']
    %29 = vsyncpa [#allocation4], 0
    %30 = vsyncpa [#allocation6], 0
    // Predicated region
    $region2: #{tpu_custom_call.1} parent=1 // pred_check
      _
    $region3: #{tpu_custom_call.1} parent=1 // pred_check_branch
      %32 = sbr.rel (0) target = $region5
    $region4: #{tpu_custom_call.1} parent=1 // pred_region
      _
    $region5: #{tpu_custom_call.1} parent=1 // pred_fallthru
      _
    // Predicated region
    $region6: #{tpu_custom_call.1} parent=1 // pred_check
      _
    $region7: #{tpu_custom_call.1} parent=1 // pred_check_branch
      %34 = sbr.rel (0) target = $region9
    $region8: #{tpu_custom_call.1} parent=1 // pred_region
      _
    $region9: #{tpu_custom_call.1} parent=1 // pred_fallthru
      _
    // Predicated region
    $region10: #{tpu_custom_call.1} parent=1 // pred_check
      _
    $region11: #{tpu_custom_call.1} parent=1 // pred_check_branch
      %36 = sbr.rel (0) target = $region13
    $region12: #{tpu_custom_call.1} parent=1 // pred_region
      _
    $region13: #{tpu_custom_call.1} parent=1 // pred_fallthru
      _
    // Predicated region
    $region14: #{tpu_custom_call.1} parent=1 // pred_check
      _
    $region15: #{tpu_custom_call.1} parent=1 // pred_check_branch
      %38 = sbr.rel (0) target = $region17
    $region16: #{tpu_custom_call.1} parent=1 // pred_region
      _
    $region17: #{tpu_custom_call.1} parent=1 // pred_fallthru
      _
    // Predicated region
    $region18: #{tpu_custom_call.1} parent=1 // pred_check
      _
    $region19: #{tpu_custom_call.1} parent=1 // pred_check_branch
      %40 = sbr.rel (0) target = $region21
    $region20: #{tpu_custom_call.1} parent=1 // pred_region
      _
    $region21: #{tpu_custom_call.1} parent=1 // pred_fallthru
      _
    // Predicated region
    $region22: #{tpu_custom_call.1} parent=1 // pred_check
      _
    $region23: #{tpu_custom_call.1} parent=1 // pred_check_branch
      %42 = sbr.rel (0) target = $region25
    $region24: #{tpu_custom_call.1} parent=1 // pred_region
      _
    $region25: #{tpu_custom_call.1} parent=1 // pred_fallthru
      _
    // Predicated region
    $region26: #{tpu_custom_call.1} parent=1 // pred_check
      _
    $region27: #{tpu_custom_call.1} parent=1 // pred_check_branch
      %44 = sbr.rel (0) target = $region29
    $region28: #{tpu_custom_call.1} parent=1 // pred_region
      _
    $region29: #{tpu_custom_call.1} parent=1 // pred_fallthru
      _
    // Predicated region
    $region30: #{tpu_custom_call.1} parent=1 // pred_check
      _
    $region31: #{tpu_custom_call.1} parent=1 // pred_check_branch
      %46 = sbr.rel (0) target = $region33
    $region32: #{tpu_custom_call.1} parent=1 // pred_region
      _
    $region33: #{tpu_custom_call.1} parent=1 // pred_fallthru
      _
    // Predicated region
    $region34: #{tpu_custom_call.1} parent=1 // pred_check
      _
    $region35: #{tpu_custom_call.1} parent=1 // pred_check_branch
      %48 = sbr.rel (0) target = $region37
    $region36: #{tpu_custom_call.1} parent=1 // pred_region
      _
    $region37: #{tpu_custom_call.1} parent=1 // pred_fallthru
      _
    // Predicated region
    $region38: #{tpu_custom_call.1} parent=1 // pred_check
      _
    $region39: #{tpu_custom_call.1} parent=1 // pred_check_branch
      %50 = sbr.rel (0) target = $region41
    $region40: #{tpu_custom_call.1} parent=1 // pred_region
      _
    $region41: #{tpu_custom_call.1} parent=1 // pred_fallthru
      _
    // Predicated region
    $region42: #{tpu_custom_call.1} parent=1 // pred_check
      _
    $region43: #{tpu_custom_call.1} parent=1 // pred_check_branch
      %52 = sbr.rel (0) target = $region45
    $region44: #{tpu_custom_call.1} parent=1 // pred_region
      _
    $region45: #{tpu_custom_call.1} parent=1 // pred_fallthru
      _
    // Predicated region
    $region46: #{tpu_custom_call.1} parent=1 // pred_check
      _
    $region47: #{tpu_custom_call.1} parent=1 // pred_check_branch
      %54 = sbr.rel (0) target = $region49
    $region48: #{tpu_custom_call.1} parent=1 // pred_region
      _
    $region49: #{tpu_custom_call.1} parent=1 // pred_fallthru
      _
    // Predicated region
    $region50: #{tpu_custom_call.1} parent=1 // pred_check
      _
    $region51: #{tpu_custom_call.1} parent=1 // pred_check_branch
      %56 = sbr.rel (0) target = $region53
    $region52: #{tpu_custom_call.1} parent=1 // pred_region
      _
    $region53: #{tpu_custom_call.1} parent=1 // pred_fallthru
      _
    // Predicated region
    $region54: #{tpu_custom_call.1} parent=1 // pred_check
      _
    $region55: #{tpu_custom_call.1} parent=1 // pred_check_branch
      %58 = sbr.rel (0) target = $region57
    $region56: #{tpu_custom_call.1} parent=1 // pred_region
      _
    $region57: #{tpu_custom_call.1} parent=1 // pred_fallthru
      _
    // Predicated region
    $region58: #{tpu_custom_call.1} parent=1 // pred_check
      _
    $region59: #{tpu_custom_call.1} parent=1 // pred_check_branch
      %60 = sbr.rel (0) target = $region61
    $region60: #{tpu_custom_call.1} parent=1 // pred_region
      _
    $region61: #{tpu_custom_call.1} parent=1 // pred_fallthru
      _
    // Predicated region
    $region62: #{tpu_custom_call.1} parent=1 // pred_check
      _
    $region63: #{tpu_custom_call.1} parent=1 // pred_check_branch
      %62 = sbr.rel (0) target = $region65
    $region64: #{tpu_custom_call.1} parent=1 // pred_region
      _
    $region65: #{tpu_custom_call.1} parent=1 // pred_fallthru
      _
    // Predicated region
    $region66: #{tpu_custom_call.1} parent=1 // pred_check
      _
    $region67: #{tpu_custom_call.1} parent=1 // pred_check_branch
      %64 = sbr.rel (0) target = $region69
    $region68: #{tpu_custom_call.1} parent=1 // pred_region
      _
    $region69: #{tpu_custom_call.1} parent=1 // pred_fallthru
      _
    // Predicated region
    $region70: #{tpu_custom_call.1} parent=1 // pred_check
      _
    $region71: #{tpu_custom_call.1} parent=1 // pred_check_branch
      %66 = sbr.rel (0) target = $region73
    $region72: #{tpu_custom_call.1} parent=1 // pred_region
      _
    $region73: #{tpu_custom_call.1} parent=1 // pred_fallthru
      _
    // Predicated region
    $region74: #{tpu_custom_call.1} parent=1 // pred_check
      _
    $region75: #{tpu_custom_call.1} parent=1 // pred_check_branch
      %68 = sbr.rel (0) target = $region77
    $region76: #{tpu_custom_call.1} parent=1 // pred_region
      _
    $region77: #{tpu_custom_call.1} parent=1 // pred_fallthru
      _
    // Predicated region
    $region78: #{tpu_custom_call.1} parent=1 // pred_check
      _
    $region79: #{tpu_custom_call.1} parent=1 // pred_check_branch
      %70 = sbr.rel (0) target = $region81
    $region80: #{tpu_custom_call.1} parent=1 // pred_region
      _
    $region81: #{tpu_custom_call.1} parent=1 // pred_fallthru
      _
    // Predicated region
    $region82: #{tpu_custom_call.1} parent=1 // pred_check
      _
    $region83: #{tpu_custom_call.1} parent=1 // pred_check_branch
      %72 = sbr.rel (0) target = $region85
    $region84: #{tpu_custom_call.1} parent=1 // pred_region
      _
    $region85: #{tpu_custom_call.1} parent=1 // pred_fallthru
      _
    %v74 = vld [vmem:[%s0] sm:$0xff]
    %v76 = vcombine.high %v74, %v74
    %v78 = vpack.c.bf16 %v74, %v74
    %v79 = vpack.c.bf16 %v76, %v76
    %v80 = vld [vmem:[%s1] sm:$0xff]
    %v81 = vld [vmem:[%s1 + $0x8] sm:$0xff]
    %v82 = vpack.c.bf16 %v80, %v80
    %v83 = vpack.c.bf16 %v81, %v81
    %s84 = sld [smem:[#allocation2]]
    %v85 = vld [vmem:[%s2] sm:$0x3]
    %vm86 = vcmask 64512
    %v88 = vsel %vm86, %v85, 0
    %vm90 = vcmask 1043456
    %v92 = vsel %vm90, %v82, 0
    %v95 = vsel %vm90, %v83, 0
    %97 = vmatprep.subr.bf16.mxu0 0
    %98 = vmatpush1.bf16.msra.mxu0 0
    %99 = vmatprep.subr.bf16.mxu0 0
    %100 = vmatpush1.bf16.msra.mxu0 0
    %101 = vmatprep.subr.bf16.mxu0 0
    %102 = vmatpush1.bf16.msra.mxu0 0
    %103 = vmatprep.subr.bf16.mxu0 0
    %104 = vmatpush1.bf16.msra.mxu0 0
    %105 = vmatprep.subr.bf16.mxu0 0
    %106 = vmatpush1.bf16.msra.mxu0 0
    %107 = vmatprep.subr.bf16.mxu0 0
    %108 = vmatpush1.bf16.msra.mxu0 0
    %109 = vmatprep.subr.bf16.mxu0 0
    %110 = vmatpush1.bf16.msra.mxu0 0
    %111 = vmatprep.subr.bf16.mxu0 %v95
    %112 = vmatpush1.bf16.msra.mxu0 %v92
    %113 = vmatprep.subr.bf16.mxu0 0
    %114 = vmatpush2.bf16.msra.mxu0 0
    %115 = vmatprep.subr.bf16.mxu0 0
    %116 = vmatpush2.bf16.msra.mxu0 0
    %117 = vmatprep.subr.bf16.mxu0 0
    %118 = vmatpush2.bf16.msra.mxu0 0
    %119 = vmatprep.subr.bf16.mxu0 0
    %120 = vmatpush2.bf16.msra.mxu0 0
    %121 = vmatprep.subr.bf16.mxu0 0
    %122 = vmatpush2.bf16.msra.mxu0 0
    %123 = vmatprep.subr.bf16.mxu0 0
    %124 = vmatpush2.bf16.msra.mxu0 0
    %125 = vmatprep.subr.bf16.mxu0 0
    %126 = vmatpush2.bf16.msra.mxu0 0
    %127 = vmatprep.subr.bf16.mxu0 0
    %128 = vmatpush2.bf16.msra.mxu0 0
    %129 = vmatprep.mubr.bf16.mxu0 0
    %130 = vmatmul.mubr.bf16.gmra.mxu0 %v88
    %v131 = vpop.f32.mrf.mxu0
    %v132 = vadd.f32 0.0, %v131
    %v133 = vpop.f32.mrf.mxu0
    %v134 = vadd.f32 0.0, %v133
    %v135 = vpop.f32.mrf.mxu0
    %v136 = vpop.f32.mrf.mxu0
    %137 = vdwg.mxu0
    %v138 = vld [vmem:[%s3] sm:$0xf]
    %v139 = vld [vmem:[%s3 + $0x4] sm:$0xf]
    %v140 = vld [vmem:[%s3 + $0x8] sm:$0xf]
    %v141 = vld [vmem:[%s3 + $0xc] sm:$0xf]
    %v142 = vld [vmem:[%s3 + $0x10] sm:$0xf]
    %v143 = vld [vmem:[%s3 + $0x14] sm:$0xf]
    %v144 = vld [vmem:[%s3 + $0x18] sm:$0xf]
    %v145 = vld [vmem:[%s3 + $0x1c] sm:$0xf]
    %v146 = vld [vmem:[%s4] sm:$0xff]
    %v147 = vld [vmem:[%s4 + $0x8] sm:$0xff]
    %v148 = vld [vmem:[%s4 + $0x10] sm:$0xff]
    %v149 = vld [vmem:[%s4 + $0x18] sm:$0xff]
    %v150 = vld [vmem:[%s4 + $0x20] sm:$0xff]
    %v151 = vld [vmem:[%s4 + $0x28] sm:$0xff]
    %v152 = vld [vmem:[%s4 + $0x30] sm:$0xff]
    %v153 = vld [vmem:[%s4 + $0x38] sm:$0xff]
    %155 = vset.pattern.permute.xlu0 0
    %156 = vperm.xlu0 %155, %v146
    %v157 = vpop.permute.xlu0 %156
    %160 = vset.pattern.permute.xlu0 0
    %161 = vperm.xlu0 %160, %v147
    %v162 = vpop.permute.xlu0 %161
    %165 = vset.pattern.permute.xlu0 0
    %166 = vperm.xlu0 %165, %v148
    %v167 = vpop.permute.xlu0 %166
    %170 = vset.pattern.permute.xlu0 0
    %171 = vperm.xlu0 %170, %v149
    %v172 = vpop.permute.xlu0 %171
    %175 = vset.pattern.permute.xlu0 0
    %176 = vperm.xlu0 %175, %v150
    %v177 = vpop.permute.xlu0 %176
    %180 = vset.pattern.permute.xlu0 0
    %181 = vperm.xlu0 %180, %v151
    %v182 = vpop.permute.xlu0 %181
    %185 = vset.pattern.permute.xlu0 0
    %186 = vperm.xlu0 %185, %v152
    %v187 = vpop.permute.xlu0 %186
    %190 = vset.pattern.permute.xlu0 0
    %191 = vperm.xlu0 %190, %v153
    %v192 = vpop.permute.xlu0 %191
    %v202 = vunpack.c.l.b16 %v138
    %v203 = vunpack.c.l.b16 %v139
    %v204 = vunpack.c.l.b16 %v140
    %v205 = vunpack.c.l.b16 %v141
    %v206 = vunpack.c.l.b16 %v142
    %v207 = vunpack.c.l.b16 %v143
    %v208 = vunpack.c.l.b16 %v144
    %v209 = vunpack.c.l.b16 %v145
    %v210 = vpack.c.b16 %v203, %v202
    %v211 = vpack.c.b16 %v205, %v204
    %v212 = vpack.c.b16 %v207, %v206
    %v213 = vpack.c.b16 %v209, %v208
    %vm214 = vcmask 31744
    %v216 = vsel %vm214, %v210, 0
    %v219 = vsel %vm214, %v211, 0
    %v222 = vsel %vm214, %v212, 0
    %v225 = vsel %vm214, %v213, 0
    %vm227 = vcmask 1041408
    %v229 = vsel %vm227, %v78, 0
    %v232 = vsel %vm227, %v79, 0
    %234 = vmatprep.subr.bf16.mxu0 0
    %235 = vmatpush1.bf16.msra.mxu0 0
    %236 = vmatprep.subr.bf16.mxu0 0
    %237 = vmatpush1.bf16.msra.mxu0 0
    %238 = vmatprep.subr.bf16.mxu0 0
    %239 = vmatpush1.bf16.msra.mxu0 0
    %240 = vmatprep.subr.bf16.mxu0 0
    %241 = vmatpush1.bf16.msra.mxu0 0
    %242 = vmatprep.subr.bf16.mxu0 0
    %243 = vmatpush1.bf16.msra.mxu0 0
    %244 = vmatprep.subr.bf16.mxu0 0
    %245 = vmatpush1.bf16.msra.mxu0 0
    %246 = vmatprep.subr.bf16.mxu0 0
    %247 = vmatpush1.bf16.msra.mxu0 0
    %248 = vmatprep.subr.bf16.mxu0 %v232
    %249 = vmatpush1.bf16.msra.mxu0 %v229
    %250 = vmatprep.subr.bf16.mxu0 0
    %251 = vmatpush2.bf16.msra.mxu0 0
    %252 = vmatprep.subr.bf16.mxu0 0
    %253 = vmatpush2.bf16.msra.mxu0 0
    %254 = vmatprep.subr.bf16.mxu0 0
    %255 = vmatpush2.bf16.msra.mxu0 0
    %256 = vmatprep.subr.bf16.mxu0 0
    %257 = vmatpush2.bf16.msra.mxu0 0
    %258 = vmatprep.subr.bf16.mxu0 0
    %259 = vmatpush2.bf16.msra.mxu0 0
    %260 = vmatprep.subr.bf16.mxu0 0
    %261 = vmatpush2.bf16.msra.mxu0 0
    %262 = vmatprep.subr.bf16.mxu0 0
    %263 = vmatpush2.bf16.msra.mxu0 0
    %264 = vmatprep.subr.bf16.mxu0 0
    %265 = vmatpush2.bf16.msra.mxu0 0
    %266 = vmatprep.mubr.bf16.mxu0 0
    %267 = vmatmul.mubr.bf16.gmra.mxu0 %v216
    %v268 = vpop.f32.mrf.mxu0
    %v269 = vadd.f32 %v157, %v268
    %v270 = vpop.f32.mrf.mxu0
    %v271 = vadd.f32 %v157, %v270
    %v272 = vpop.f32.mrf.mxu0
    %v273 = vadd.f32 %v162, %v272
    %v274 = vpop.f32.mrf.mxu0
    %v275 = vadd.f32 %v162, %v274
    %276 = vmatprep.mubr.bf16.mxu0 0
    %277 = vmatmul.mubr.bf16.gmra.mxu0 %v219
    %v278 = vpop.f32.mrf.mxu0
    %v279 = vadd.f32 %v167, %v278
    %v280 = vpop.f32.mrf.mxu0
    %v281 = vadd.f32 %v167, %v280
    %v282 = vpop.f32.mrf.mxu0
    %v283 = vadd.f32 %v172, %v282
    %v284 = vpop.f32.mrf.mxu0
    %v285 = vadd.f32 %v172, %v284
    %286 = vmatprep.mubr.bf16.mxu0 0
    %287 = vmatmul.mubr.bf16.gmra.mxu0 %v222
    %v288 = vpop.f32.mrf.mxu0
    %v289 = vadd.f32 %v177, %v288
    %v290 = vpop.f32.mrf.mxu0
    %v291 = vadd.f32 %v177, %v290
    %v292 = vpop.f32.mrf.mxu0
    %v293 = vadd.f32 %v182, %v292
    %v294 = vpop.f32.mrf.mxu0
    %v295 = vadd.f32 %v182, %v294
    %296 = vmatprep.mubr.bf16.mxu0 0
    %297 = vmatmul.mubr.bf16.gmra.mxu0 %v225
    %v298 = vpop.f32.mrf.mxu0
    %v299 = vadd.f32 %v187, %v298
    %v300 = vpop.f32.mrf.mxu0
    %v301 = vadd.f32 %v187, %v300
    %v302 = vpop.f32.mrf.mxu0
    %v303 = vadd.f32 %v192, %v302
    %v304 = vpop.f32.mrf.mxu0
    %v305 = vadd.f32 %v192, %v304
    %306 = vdwg.mxu0
    %v307 = vmax.f32 %v269, 0.0
    %v308 = vmax.f32 %v271, 0.0
    %v309 = vmax.f32 %v273, 0.0
    %v310 = vmax.f32 %v275, 0.0
    %v311 = vmax.f32 %v279, 0.0
    %v312 = vmax.f32 %v281, 0.0
    %v313 = vmax.f32 %v283, 0.0
    %v314 = vmax.f32 %v285, 0.0
    %v315 = vmax.f32 %v289, 0.0
    %v316 = vmax.f32 %v291, 0.0
    %v317 = vmax.f32 %v293, 0.0
    %v318 = vmax.f32 %v295, 0.0
    %v319 = vmax.f32 %v299, 0.0
    %v320 = vmax.f32 %v301, 0.0
    %v321 = vmax.f32 %v303, 0.0
    %v322 = vmax.f32 %v305, 0.0
    %v323 = vpack.c.bf16 %v309, %v307
    %v324 = vpack.c.bf16 %v310, %v308
    %v325 = vpack.c.bf16 %v313, %v311
    %v326 = vpack.c.bf16 %v314, %v312
    %v327 = vpack.c.bf16 %v317, %v315
    %v328 = vpack.c.bf16 %v318, %v316
    %v329 = vpack.c.bf16 %v321, %v319
    %v330 = vpack.c.bf16 %v322, %v320
    %v331 = vld [vmem:[%s5] sm:$0xf]
    %v332 = vld [vmem:[%s5 + $0x4] sm:$0xf]
    %v333 = vld [vmem:[%s5 + $0x8] sm:$0xf]
    %v334 = vld [vmem:[%s5 + $0xc] sm:$0xf]
    %v335 = vld [vmem:[%s5 + $0x10] sm:$0xf]
    %v336 = vld [vmem:[%s5 + $0x14] sm:$0xf]
    %v337 = vld [vmem:[%s5 + $0x18] sm:$0xf]
    %v338 = vld [vmem:[%s5 + $0x1c] sm:$0xf]
    %v339 = vld [vmem:[%s5 + $0x20] sm:$0xf]
    %v340 = vld [vmem:[%s5 + $0x24] sm:$0xf]
    %v341 = vld [vmem:[%s5 + $0x28] sm:$0xf]
    %v342 = vld [vmem:[%s5 + $0x2c] sm:$0xf]
    %v343 = vld [vmem:[%s5 + $0x30] sm:$0xf]
    %v344 = vld [vmem:[%s5 + $0x34] sm:$0xf]
    %v345 = vld [vmem:[%s5 + $0x38] sm:$0xf]
    %v346 = vld [vmem:[%s5 + $0x3c] sm:$0xf]
    %v347 = vld [vmem:[%s6] sm:$0xff]
    %v348 = vld [vmem:[%s6 + $0x8] sm:$0xff]
    %v349 = vld [vmem:[%s6 + $0x10] sm:$0xff]
    %v350 = vld [vmem:[%s6 + $0x18] sm:$0xff]
    %v351 = vld [vmem:[%s6 + $0x20] sm:$0xff]
    %v352 = vld [vmem:[%s6 + $0x28] sm:$0xff]
    %v353 = vld [vmem:[%s6 + $0x30] sm:$0xff]
    %v354 = vld [vmem:[%s6 + $0x38] sm:$0xff]
    %v355 = vld [vmem:[%s6 + $0x40] sm:$0xff]
    %v356 = vld [vmem:[%s6 + $0x48] sm:$0xff]
    %v357 = vld [vmem:[%s6 + $0x50] sm:$0xff]
    %v358 = vld [vmem:[%s6 + $0x58] sm:$0xff]
    %v359 = vld [vmem:[%s6 + $0x60] sm:$0xff]
    %v360 = vld [vmem:[%s6 + $0x68] sm:$0xff]
    %v361 = vld [vmem:[%s6 + $0x70] sm:$0xff]
    %v362 = vld [vmem:[%s6 + $0x78] sm:$0xff]
    %364 = vset.pattern.permute.xlu0 0
    %365 = vperm.xlu0 %364, %v347
    %v366 = vpop.permute.xlu0 %365
    %369 = vset.pattern.permute.xlu0 0
    %370 = vperm.xlu0 %369, %v348
    %v371 = vpop.permute.xlu0 %370
    %374 = vset.pattern.permute.xlu0 0
    %375 = vperm.xlu0 %374, %v349
    %v376 = vpop.permute.xlu0 %375
    %379 = vset.pattern.permute.xlu0 0
    %380 = vperm.xlu0 %379, %v350
    %v381 = vpop.permute.xlu0 %380
    %384 = vset.pattern.permute.xlu0 0
    %385 = vperm.xlu0 %384, %v351
    %v386 = vpop.permute.xlu0 %385
    %389 = vset.pattern.permute.xlu0 0
    %390 = vperm.xlu0 %389, %v352
    %v391 = vpop.permute.xlu0 %390
    %394 = vset.pattern.permute.xlu0 0
    %395 = vperm.xlu0 %394, %v353
    %v396 = vpop.permute.xlu0 %395
    %399 = vset.pattern.permute.xlu0 0
    %400 = vperm.xlu0 %399, %v354
    %v401 = vpop.permute.xlu0 %400
    %404 = vset.pattern.permute.xlu0 0
    %405 = vperm.xlu0 %404, %v355
    %v406 = vpop.permute.xlu0 %405
    %409 = vset.pattern.permute.xlu0 0
    %410 = vperm.xlu0 %409, %v356
    %v411 = vpop.permute.xlu0 %410
    %414 = vset.pattern.permute.xlu0 0
    %415 = vperm.xlu0 %414, %v357
    %v416 = vpop.permute.xlu0 %415
    %419 = vset.pattern.permute.xlu0 0
    %420 = vperm.xlu0 %419, %v358
    %v421 = vpop.permute.xlu0 %420
    %424 = vset.pattern.permute.xlu0 0
    %425 = vperm.xlu0 %424, %v359
    %v426 = vpop.permute.xlu0 %425
    %429 = vset.pattern.permute.xlu0 0
    %430 = vperm.xlu0 %429, %v360
    %v431 = vpop.permute.xlu0 %430
    %434 = vset.pattern.permute.xlu0 0
    %435 = vperm.xlu0 %434, %v361
    %v436 = vpop.permute.xlu0 %435
    %439 = vset.pattern.permute.xlu0 0
    %440 = vperm.xlu0 %439, %v362
    %v441 = vpop.permute.xlu0 %440
    %v459 = vunpack.c.l.b16 %v331
    %v460 = vunpack.c.l.b16 %v332
    %v461 = vunpack.c.l.b16 %v333
    %v462 = vunpack.c.l.b16 %v334
    %v463 = vunpack.c.l.b16 %v335
    %v464 = vunpack.c.l.b16 %v336
    %v465 = vunpack.c.l.b16 %v337
    %v466 = vunpack.c.l.b16 %v338
    %v467 = vunpack.c.l.b16 %v339
    %v468 = vunpack.c.l.b16 %v340
    %v469 = vunpack.c.l.b16 %v341
    %v470 = vunpack.c.l.b16 %v342
    %v471 = vunpack.c.l.b16 %v343
    %v472 = vunpack.c.l.b16 %v344
    %v473 = vunpack.c.l.b16 %v345
    %v474 = vunpack.c.l.b16 %v346
    %v475 = vpack.c.b16 %v460, %v459
    %v476 = vpack.c.b16 %v462, %v461
    %v477 = vpack.c.b16 %v464, %v463
    %v478 = vpack.c.b16 %v466, %v465
    %v479 = vpack.c.b16 %v468, %v467
    %v480 = vpack.c.b16 %v470, %v469
    %v481 = vpack.c.b16 %v472, %v471
    %v482 = vpack.c.b16 %v474, %v473
    %vm483 = vcmask 523264
    %v485 = vsel %vm483, %v475, 0
    %v488 = vsel %vm483, %v476, 0
    %v491 = vsel %vm483, %v477, 0
    %v494 = vsel %vm483, %v478, 0
    %v497 = vsel %vm483, %v479, 0
    %v500 = vsel %vm483, %v480, 0
    %v503 = vsel %vm483, %v481, 0
    %v506 = vsel %vm483, %v482, 0
    %508 = vmatprep.subr.bf16.mxu0 0
    %509 = vmatpush1.bf16.msra.mxu0 0
    %510 = vmatprep.subr.bf16.mxu0 0
    %511 = vmatpush1.bf16.msra.mxu0 0
    %512 = vmatprep.subr.bf16.mxu0 0
    %513 = vmatpush1.bf16.msra.mxu0 0
    %514 = vmatprep.subr.bf16.mxu0 0
    %515 = vmatpush1.bf16.msra.mxu0 0
    %516 = vmatprep.subr.bf16.mxu0 %v330
    %517 = vmatpush1.bf16.msra.mxu0 %v329
    %518 = vmatprep.subr.bf16.mxu0 %v328
    %519 = vmatpush1.bf16.msra.mxu0 %v327
    %520 = vmatprep.subr.bf16.mxu0 %v326
    %521 = vmatpush1.bf16.msra.mxu0 %v325
    %522 = vmatprep.subr.bf16.mxu0 %v324
    %523 = vmatpush1.bf16.msra.mxu0 %v323
    %524 = vmatprep.subr.bf16.mxu0 0
    %525 = vmatpush2.bf16.msra.mxu0 0
    %526 = vmatprep.subr.bf16.mxu0 0
    %527 = vmatpush2.bf16.msra.mxu0 0
    %528 = vmatprep.subr.bf16.mxu0 0
    %529 = vmatpush2.bf16.msra.mxu0 0
    %530 = vmatprep.subr.bf16.mxu0 0
    %531 = vmatpush2.bf16.msra.mxu0 0
    %532 = vmatprep.subr.bf16.mxu0 0
    %533 = vmatpush2.bf16.msra.mxu0 0
    %534 = vmatprep.subr.bf16.mxu0 0
    %535 = vmatpush2.bf16.msra.mxu0 0
    %536 = vmatprep.subr.bf16.mxu0 0
    %537 = vmatpush2.bf16.msra.mxu0 0
    %538 = vmatprep.subr.bf16.mxu0 0
    %539 = vmatpush2.bf16.msra.mxu0 0
    %540 = vmatprep.mubr.bf16.mxu0 0
    %541 = vmatmul.mubr.bf16.gmra.mxu0 %v485
    %v542 = vpop.f32.mrf.mxu0
    %v543 = vadd.f32 %v366, %v542
    %v544 = vpop.f32.mrf.mxu0
    %v545 = vadd.f32 %v366, %v544
    %v546 = vpop.f32.mrf.mxu0
    %v547 = vadd.f32 %v371, %v546
    %v548 = vpop.f32.mrf.mxu0
    %v549 = vadd.f32 %v371, %v548
    %550 = vmatprep.mubr.bf16.mxu0 0
    %551 = vmatmul.mubr.bf16.gmra.mxu0 %v488
    %v552 = vpop.f32.mrf.mxu0
    %v553 = vadd.f32 %v376, %v552
    %v554 = vpop.f32.mrf.mxu0
    %v555 = vadd.f32 %v376, %v554
    %v556 = vpop.f32.mrf.mxu0
    %v557 = vadd.f32 %v381, %v556
    %v558 = vpop.f32.mrf.mxu0
    %v559 = vadd.f32 %v381, %v558
    %560 = vmatprep.mubr.bf16.mxu0 0
    %561 = vmatmul.mubr.bf16.gmra.mxu0 %v491
    %v562 = vpop.f32.mrf.mxu0
    %v563 = vadd.f32 %v386, %v562
    %v564 = vpop.f32.mrf.mxu0
    %v565 = vadd.f32 %v386, %v564
    %v566 = vpop.f32.mrf.mxu0
    %v567 = vadd.f32 %v391, %v566
    %v568 = vpop.f32.mrf.mxu0
    %v569 = vadd.f32 %v391, %v568
    %570 = vmatprep.mubr.bf16.mxu0 0
    %571 = vmatmul.mubr.bf16.gmra.mxu0 %v494
    %v572 = vpop.f32.mrf.mxu0
    %v573 = vadd.f32 %v396, %v572
    %v574 = vpop.f32.mrf.mxu0
    %v575 = vadd.f32 %v396, %v574
    %v576 = vpop.f32.mrf.mxu0
    %v577 = vadd.f32 %v401, %v576
    %v578 = vpop.f32.mrf.mxu0
    %v579 = vadd.f32 %v401, %v578
    %580 = vmatprep.mubr.bf16.mxu0 0
    %581 = vmatmul.mubr.bf16.gmra.mxu0 %v497
    %v582 = vpop.f32.mrf.mxu0
    %v583 = vadd.f32 %v406, %v582
    %v584 = vpop.f32.mrf.mxu0
    %v585 = vadd.f32 %v406, %v584
    %v586 = vpop.f32.mrf.mxu0
    %v587 = vadd.f32 %v411, %v586
    %v588 = vpop.f32.mrf.mxu0
    %v589 = vadd.f32 %v411, %v588
    %590 = vmatprep.mubr.bf16.mxu0 0
    %591 = vmatmul.mubr.bf16.gmra.mxu0 %v500
    %v592 = vpop.f32.mrf.mxu0
    %v593 = vadd.f32 %v416, %v592
    %v594 = vpop.f32.mrf.mxu0
    %v595 = vadd.f32 %v416, %v594
    %v596 = vpop.f32.mrf.mxu0
    %v597 = vadd.f32 %v421, %v596
    %v598 = vpop.f32.mrf.mxu0
    %v599 = vadd.f32 %v421, %v598
    %600 = vmatprep.mubr.bf16.mxu0 0
    %601 = vmatmul.mubr.bf16.gmra.mxu0 %v503
    %v602 = vpop.f32.mrf.mxu0
    %v603 = vadd.f32 %v426, %v602
    %v604 = vpop.f32.mrf.mxu0
    %v605 = vadd.f32 %v426, %v604
    %v606 = vpop.f32.mrf.mxu0
    %v607 = vadd.f32 %v431, %v606
    %v608 = vpop.f32.mrf.mxu0
    %v609 = vadd.f32 %v431, %v608
    %610 = vmatprep.mubr.bf16.mxu0 0
    %611 = vmatmul.mubr.bf16.gmra.mxu0 %v506
    %v612 = vpop.f32.mrf.mxu0
    %v613 = vadd.f32 %v436, %v612
    %v614 = vpop.f32.mrf.mxu0
    %v615 = vadd.f32 %v436, %v614
    %v616 = vpop.f32.mrf.mxu0
    %v617 = vadd.f32 %v441, %v616
    %v618 = vpop.f32.mrf.mxu0
    %v619 = vadd.f32 %v441, %v618
    %620 = vdwg.mxu0
    %v621 = vmax.f32 %v543, 0.0
    %v622 = vmax.f32 %v545, 0.0
    %v623 = vmax.f32 %v547, 0.0
    %v624 = vmax.f32 %v549, 0.0
    %v625 = vmax.f32 %v553, 0.0
    %v626 = vmax.f32 %v555, 0.0
    %v627 = vmax.f32 %v557, 0.0
    %v628 = vmax.f32 %v559, 0.0
    %v629 = vmax.f32 %v563, 0.0
    %v630 = vmax.f32 %v565, 0.0
    %v631 = vmax.f32 %v567, 0.0
    %v632 = vmax.f32 %v569, 0.0
    %v633 = vmax.f32 %v573, 0.0
    %v634 = vmax.f32 %v575, 0.0
    %v635 = vmax.f32 %v577, 0.0
    %v636 = vmax.f32 %v579, 0.0
    %v637 = vmax.f32 %v583, 0.0
    %v638 = vmax.f32 %v585, 0.0
    %v639 = vmax.f32 %v587, 0.0
    %v640 = vmax.f32 %v589, 0.0
    %v641 = vmax.f32 %v593, 0.0
    %v642 = vmax.f32 %v595, 0.0
    %v643 = vmax.f32 %v597, 0.0
    %v644 = vmax.f32 %v599, 0.0
    %v645 = vmax.f32 %v603, 0.0
    %v646 = vmax.f32 %v605, 0.0
    %v647 = vmax.f32 %v607, 0.0
    %v648 = vmax.f32 %v609, 0.0
    %v649 = vmax.f32 %v613, 0.0
    %v650 = vmax.f32 %v615, 0.0
    %v651 = vmax.f32 %v617, 0.0
    %v652 = vmax.f32 %v619, 0.0
    %v653 = vpack.c.bf16 %v623, %v621
    %v654 = vpack.c.bf16 %v624, %v622
    %v655 = vpack.c.bf16 %v627, %v625
    %v656 = vpack.c.bf16 %v628, %v626
    %v657 = vpack.c.bf16 %v631, %v629
    %v658 = vpack.c.bf16 %v632, %v630
    %v659 = vpack.c.bf16 %v635, %v633
    %v660 = vpack.c.bf16 %v636, %v634
    %v661 = vpack.c.bf16 %v639, %v637
    %v662 = vpack.c.bf16 %v640, %v638
    %v663 = vpack.c.bf16 %v643, %v641
    %v664 = vpack.c.bf16 %v644, %v642
    %v665 = vpack.c.bf16 %v647, %v645
    %v666 = vpack.c.bf16 %v648, %v646
    %v667 = vpack.c.bf16 %v651, %v649
    %v668 = vpack.c.bf16 %v652, %v650
    %v669 = vld [vmem:[%s7] sm:$0xf]
    %v670 = vld [vmem:[%s7 + $0x4] sm:$0xf]
    %v671 = vld [vmem:[%s7 + $0x8] sm:$0xf]
    %v672 = vld [vmem:[%s7 + $0xc] sm:$0xf]
    %v673 = vld [vmem:[%s7 + $0x10] sm:$0xf]
    %v674 = vld [vmem:[%s7 + $0x14] sm:$0xf]
    %v675 = vld [vmem:[%s7 + $0x18] sm:$0xf]
    %v676 = vld [vmem:[%s7 + $0x1c] sm:$0xf]
    %v677 = vld [vmem:[%s7 + $0x20] sm:$0xf]
    %v678 = vld [vmem:[%s7 + $0x24] sm:$0xf]
    %v679 = vld [vmem:[%s7 + $0x28] sm:$0xf]
    %v680 = vld [vmem:[%s7 + $0x2c] sm:$0xf]
    %v681 = vld [vmem:[%s7 + $0x30] sm:$0xf]
    %v682 = vld [vmem:[%s7 + $0x34] sm:$0xf]
    %v683 = vld [vmem:[%s7 + $0x38] sm:$0xf]
    %v684 = vld [vmem:[%s7 + $0x3c] sm:$0xf]
    %v685 = vld [vmem:[%s7 + $0x40] sm:$0xf]
    %v686 = vld [vmem:[%s7 + $0x44] sm:$0xf]
    %v687 = vld [vmem:[%s7 + $0x48] sm:$0xf]
    %v688 = vld [vmem:[%s7 + $0x4c] sm:$0xf]
    %v689 = vld [vmem:[%s7 + $0x50] sm:$0xf]
    %v690 = vld [vmem:[%s7 + $0x54] sm:$0xf]
    %v691 = vld [vmem:[%s7 + $0x58] sm:$0xf]
    %v692 = vld [vmem:[%s7 + $0x5c] sm:$0xf]
    %v693 = vld [vmem:[%s7 + $0x60] sm:$0xf]
    %v694 = vld [vmem:[%s7 + $0x64] sm:$0xf]
    %v695 = vld [vmem:[%s7 + $0x68] sm:$0xf]
    %v696 = vld [vmem:[%s7 + $0x6c] sm:$0xf]
    %v697 = vld [vmem:[%s7 + $0x70] sm:$0xf]
    %v698 = vld [vmem:[%s7 + $0x74] sm:$0xf]
    %v699 = vld [vmem:[%s7 + $0x78] sm:$0xf]
    %v700 = vld [vmem:[%s7 + $0x7c] sm:$0xf]
    %v701 = vld [vmem:[%s8] sm:$0xff]
    %v702 = vld [vmem:[%s8 + $0x8] sm:$0xff]
    %v703 = vld [vmem:[%s8 + $0x10] sm:$0xff]
    %v704 = vld [vmem:[%s8 + $0x18] sm:$0xff]
    %v705 = vld [vmem:[%s8 + $0x20] sm:$0xff]
    %v706 = vld [vmem:[%s8 + $0x28] sm:$0xff]
    %v707 = vld [vmem:[%s8 + $0x30] sm:$0xff]
    %v708 = vld [vmem:[%s8 + $0x38] sm:$0xff]
    %v709 = vld [vmem:[%s8 + $0x40] sm:$0xff]
    %v710 = vld [vmem:[%s8 + $0x48] sm:$0xff]
    %v711 = vld [vmem:[%s8 + $0x50] sm:$0xff]
    %v712 = vld [vmem:[%s8 + $0x58] sm:$0xff]
    %v713 = vld [vmem:[%s8 + $0x60] sm:$0xff]
    %v714 = vld [vmem:[%s8 + $0x68] sm:$0xff]
    %v715 = vld [vmem:[%s8 + $0x70] sm:$0xff]
    %v716 = vld [vmem:[%s8 + $0x78] sm:$0xff]
    %v717 = vld [vmem:[%s8 + $0x80] sm:$0xff]
    %v718 = vld [vmem:[%s8 + $0x88] sm:$0xff]
    %v719 = vld [vmem:[%s8 + $0x90] sm:$0xff]
    %v720 = vld [vmem:[%s8 + $0x98] sm:$0xff]
    %v721 = vld [vmem:[%s8 + $0xa0] sm:$0xff]
    %v722 = vld [vmem:[%s8 + $0xa8] sm:$0xff]
    %v723 = vld [vmem:[%s8 + $0xb0] sm:$0xff]
    %v724 = vld [vmem:[%s8 + $0xb8] sm:$0xff]
    %v725 = vld [vmem:[%s8 + $0xc0] sm:$0xff]
    %v726 = vld [vmem:[%s8 + $0xc8] sm:$0xff]
    %v727 = vld [vmem:[%s8 + $0xd0] sm:$0xff]
    %v728 = vld [vmem:[%s8 + $0xd8] sm:$0xff]
    %v729 = vld [vmem:[%s8 + $0xe0] sm:$0xff]
    %v730 = vld [vmem:[%s8 + $0xe8] sm:$0xff]
    %v731 = vld [vmem:[%s8 + $0xf0] sm:$0xff]
    %v732 = vld [vmem:[%s8 + $0xf8] sm:$0xff]
    %734 = vset.pattern.permute.xlu0 0
    %735 = vperm.xlu0 %734, %v701
    %v736 = vpop.permute.xlu0 %735
    %739 = vset.pattern.permute.xlu0 0
    %740 = vperm.xlu0 %739, %v702
    %v741 = vpop.permute.xlu0 %740
    %744 = vset.pattern.permute.xlu0 0
    %745 = vperm.xlu0 %744, %v703
    %v746 = vpop.permute.xlu0 %745
    %749 = vset.pattern.permute.xlu0 0
    %750 = vperm.xlu0 %749, %v704
    %v751 = vpop.permute.xlu0 %750
    %754 = vset.pattern.permute.xlu0 0
    %755 = vperm.xlu0 %754, %v705
    %v756 = vpop.permute.xlu0 %755
    %759 = vset.pattern.permute.xlu0 0
    %760 = vperm.xlu0 %759, %v706
    %v761 = vpop.permute.xlu0 %760
    %764 = vset.pattern.permute.xlu0 0
    %765 = vperm.xlu0 %764, %v707
    %v766 = vpop.permute.xlu0 %765
    %769 = vset.pattern.permute.xlu0 0
    %770 = vperm.xlu0 %769, %v708
    %v771 = vpop.permute.xlu0 %770
    %774 = vset.pattern.permute.xlu0 0
    %775 = vperm.xlu0 %774, %v709
    %v776 = vpop.permute.xlu0 %775
    %779 = vset.pattern.permute.xlu0 0
    %780 = vperm.xlu0 %779, %v710
    %v781 = vpop.permute.xlu0 %780
    %784 = vset.pattern.permute.xlu0 0
    %785 = vperm.xlu0 %784, %v711
    %v786 = vpop.permute.xlu0 %785
    %789 = vset.pattern.permute.xlu0 0
    %790 = vperm.xlu0 %789, %v712
    %v791 = vpop.permute.xlu0 %790
    %794 = vset.pattern.permute.xlu0 0
    %795 = vperm.xlu0 %794, %v713
    %v796 = vpop.permute.xlu0 %795
    %799 = vset.pattern.permute.xlu0 0
    %800 = vperm.xlu0 %799, %v714
    %v801 = vpop.permute.xlu0 %800
    %804 = vset.pattern.permute.xlu0 0
    %805 = vperm.xlu0 %804, %v715
    %v806 = vpop.permute.xlu0 %805
    %809 = vset.pattern.permute.xlu0 0
    %810 = vperm.xlu0 %809, %v716
    %v811 = vpop.permute.xlu0 %810
    %814 = vset.pattern.permute.xlu0 0
    %815 = vperm.xlu0 %814, %v717
    %v816 = vpop.permute.xlu0 %815
    %819 = vset.pattern.permute.xlu0 0
    %820 = vperm.xlu0 %819, %v718
    %v821 = vpop.permute.xlu0 %820
    %824 = vset.pattern.permute.xlu0 0
    %825 = vperm.xlu0 %824, %v719
    %v826 = vpop.permute.xlu0 %825
    %829 = vset.pattern.permute.xlu0 0
    %830 = vperm.xlu0 %829, %v720
    %v831 = vpop.permute.xlu0 %830
    %834 = vset.pattern.permute.xlu0 0
    %835 = vperm.xlu0 %834, %v721
    %v836 = vpop.permute.xlu0 %835
    %839 = vset.pattern.permute.xlu0 0
    %840 = vperm.xlu0 %839, %v722
    %v841 = vpop.permute.xlu0 %840
    %844 = vset.pattern.permute.xlu0 0
    %845 = vperm.xlu0 %844, %v723
    %v846 = vpop.permute.xlu0 %845
    %849 = vset.pattern.permute.xlu0 0
    %850 = vperm.xlu0 %849, %v724
    %v851 = vpop.permute.xlu0 %850
    %854 = vset.pattern.permute.xlu0 0
    %855 = vperm.xlu0 %854, %v725
    %v856 = vpop.permute.xlu0 %855
    %859 = vset.pattern.permute.xlu0 0
    %860 = vperm.xlu0 %859, %v726
    %v861 = vpop.permute.xlu0 %860
    %864 = vset.pattern.permute.xlu0 0
    %865 = vperm.xlu0 %864, %v727
    %v866 = vpop.permute.xlu0 %865
    %869 = vset.pattern.permute.xlu0 0
    %870 = vperm.xlu0 %869, %v728
    %v871 = vpop.permute.xlu0 %870
    %874 = vset.pattern.permute.xlu0 0
    %875 = vperm.xlu0 %874, %v729
    %v876 = vpop.permute.xlu0 %875
    %879 = vset.pattern.permute.xlu0 0
    %880 = vperm.xlu0 %879, %v730
    %v881 = vpop.permute.xlu0 %880
    %884 = vset.pattern.permute.xlu0 0
    %885 = vperm.xlu0 %884, %v731
    %v886 = vpop.permute.xlu0 %885
    %889 = vset.pattern.permute.xlu0 0
    %890 = vperm.xlu0 %889, %v732
    %v891 = vpop.permute.xlu0 %890
    %v925 = vunpack.c.l.b16 %v669
    %v926 = vunpack.c.l.b16 %v670
    %v927 = vunpack.c.l.b16 %v671
    %v928 = vunpack.c.l.b16 %v672
    %v929 = vunpack.c.l.b16 %v673
    %v930 = vunpack.c.l.b16 %v674
    %v931 = vunpack.c.l.b16 %v675
    %v932 = vunpack.c.l.b16 %v676
    %v933 = vunpack.c.l.b16 %v677
    %v934 = vunpack.c.l.b16 %v678
    %v935 = vunpack.c.l.b16 %v679
    %v936 = vunpack.c.l.b16 %v680
    %v937 = vunpack.c.l.b16 %v681
    %v938 = vunpack.c.l.b16 %v682
    %v939 = vunpack.c.l.b16 %v683
    %v940 = vunpack.c.l.b16 %v684
    %v941 = vunpack.c.l.b16 %v685
    %v942 = vunpack.c.l.b16 %v686
    %v943 = vunpack.c.l.b16 %v687
    %v944 = vunpack.c.l.b16 %v688
    %v945 = vunpack.c.l.b16 %v689
    %v946 = vunpack.c.l.b16 %v690
    %v947 = vunpack.c.l.b16 %v691
    %v948 = vunpack.c.l.b16 %v692
    %v949 = vunpack.c.l.b16 %v693
    %v950 = vunpack.c.l.b16 %v694
    %v951 = vunpack.c.l.b16 %v695
    %v952 = vunpack.c.l.b16 %v696
    %v953 = vunpack.c.l.b16 %v697
    %v954 = vunpack.c.l.b16 %v698
    %v955 = vunpack.c.l.b16 %v699
    %v956 = vunpack.c.l.b16 %v700
    %v957 = vpack.c.b16 %v926, %v925
    %v958 = vpack.c.b16 %v928, %v927
    %v959 = vpack.c.b16 %v930, %v929
    %v960 = vpack.c.b16 %v932, %v931
    %v961 = vpack.c.b16 %v934, %v933
    %v962 = vpack.c.b16 %v936, %v935
    %v963 = vpack.c.b16 %v938, %v937
    %v964 = vpack.c.b16 %v940, %v939
    %v965 = vpack.c.b16 %v942, %v941
    %v966 = vpack.c.b16 %v944, %v943
    %v967 = vpack.c.b16 %v946, %v945
    %v968 = vpack.c.b16 %v948, %v947
    %v969 = vpack.c.b16 %v950, %v949
    %v970 = vpack.c.b16 %v952, %v951
    %v971 = vpack.c.b16 %v954, %v953
    %v972 = vpack.c.b16 %v956, %v955
    %989 = vmatprep.subr.bf16.mxu0 %v668
    %990 = vmatpush1.bf16.msra.mxu0 %v667
    %991 = vmatprep.subr.bf16.mxu0 %v666
    %992 = vmatpush1.bf16.msra.mxu0 %v665
    %993 = vmatprep.subr.bf16.mxu0 %v664
    %994 = vmatpush1.bf16.msra.mxu0 %v663
    %995 = vmatprep.subr.bf16.mxu0 %v662
    %996 = vmatpush1.bf16.msra.mxu0 %v661
    %997 = vmatprep.subr.bf16.mxu0 %v660
    %998 = vmatpush1.bf16.msra.mxu0 %v659
    %999 = vmatprep.subr.bf16.mxu0 %v658
    %1000 = vmatpush1.bf16.msra.mxu0 %v657
    %1001 = vmatprep.subr.bf16.mxu0 %v656
    %1002 = vmatpush1.bf16.msra.mxu0 %v655
    %1003 = vmatprep.subr.bf16.mxu0 %v654
    %1004 = vmatpush1.bf16.msra.mxu0 %v653
    %1005 = vmatprep.subr.bf16.mxu0 0
    %1006 = vmatpush2.bf16.msra.mxu0 0
    %1007 = vmatprep.subr.bf16.mxu0 0
    %1008 = vmatpush2.bf16.msra.mxu0 0
    %1009 = vmatprep.subr.bf16.mxu0 0
    %1010 = vmatpush2.bf16.msra.mxu0 0
    %1011 = vmatprep.subr.bf16.mxu0 0
    %1012 = vmatpush2.bf16.msra.mxu0 0
    %1013 = vmatprep.subr.bf16.mxu0 0
    %1014 = vmatpush2.bf16.msra.mxu0 0
    %1015 = vmatprep.subr.bf16.mxu0 0
    %1016 = vmatpush2.bf16.msra.mxu0 0
    %1017 = vmatprep.subr.bf16.mxu0 0
    %1018 = vmatpush2.bf16.msra.mxu0 0
    %1019 = vmatprep.subr.bf16.mxu0 0
    %1020 = vmatpush2.bf16.msra.mxu0 0
    %1021 = vmatprep.mubr.bf16.mxu0 0
    %1022 = vmatmul.mubr.bf16.gmra.mxu0 %v957
    %v1023 = vpop.f32.mrf.mxu0
    %v1024 = vadd.f32 %v736, %v1023
    %v1025 = vpop.f32.mrf.mxu0
    %v1026 = vadd.f32 %v736, %v1025
    %v1027 = vpop.f32.mrf.mxu0
    %v1028 = vadd.f32 %v741, %v1027
    %v1029 = vpop.f32.mrf.mxu0
    %v1030 = vadd.f32 %v741, %v1029
    %1031 = vmatprep.mubr.bf16.mxu0 0
    %1032 = vmatmul.mubr.bf16.gmra.mxu0 %v958
    %v1033 = vpop.f32.mrf.mxu0
    %v1034 = vadd.f32 %v746, %v1033
    %v1035 = vpop.f32.mrf.mxu0
    %v1036 = vadd.f32 %v746, %v1035
    %v1037 = vpop.f32.mrf.mxu0
    %v1038 = vadd.f32 %v751, %v1037
    %v1039 = vpop.f32.mrf.mxu0
    %v1040 = vadd.f32 %v751, %v1039
    %1041 = vmatprep.mubr.bf16.mxu0 0
    %1042 = vmatmul.mubr.bf16.gmra.mxu0 %v959
    %v1043 = vpop.f32.mrf.mxu0
    %v1044 = vadd.f32 %v756, %v1043
    %v1045 = vpop.f32.mrf.mxu0
    %v1046 = vadd.f32 %v756, %v1045
    %v1047 = vpop.f32.mrf.mxu0
    %v1048 = vadd.f32 %v761, %v1047
    %v1049 = vpop.f32.mrf.mxu0
    %v1050 = vadd.f32 %v761, %v1049
    %1051 = vmatprep.mubr.bf16.mxu0 0
    %1052 = vmatmul.mubr.bf16.gmra.mxu0 %v960
    %v1053 = vpop.f32.mrf.mxu0
    %v1054 = vadd.f32 %v766, %v1053
    %v1055 = vpop.f32.mrf.mxu0
    %v1056 = vadd.f32 %v766, %v1055
    %v1057 = vpop.f32.mrf.mxu0
    %v1058 = vadd.f32 %v771, %v1057
    %v1059 = vpop.f32.mrf.mxu0
    %v1060 = vadd.f32 %v771, %v1059
    %1061 = vmatprep.mubr.bf16.mxu0 0
    %1062 = vmatmul.mubr.bf16.gmra.mxu0 %v961
    %v1063 = vpop.f32.mrf.mxu0
    %v1064 = vadd.f32 %v776, %v1063
    %v1065 = vpop.f32.mrf.mxu0
    %v1066 = vadd.f32 %v776, %v1065
    %v1067 = vpop.f32.mrf.mxu0
    %v1068 = vadd.f32 %v781, %v1067
    %v1069 = vpop.f32.mrf.mxu0
    %v1070 = vadd.f32 %v781, %v1069
    %1071 = vmatprep.mubr.bf16.mxu0 0
    %1072 = vmatmul.mubr.bf16.gmra.mxu0 %v962
    %v1073 = vpop.f32.mrf.mxu0
    %v1074 = vadd.f32 %v786, %v1073
    %v1075 = vpop.f32.mrf.mxu0
    %v1076 = vadd.f32 %v786, %v1075
    %v1077 = vpop.f32.mrf.mxu0
    %v1078 = vadd.f32 %v791, %v1077
    %v1079 = vpop.f32.mrf.mxu0
    %v1080 = vadd.f32 %v791, %v1079
    %1081 = vmatprep.mubr.bf16.mxu0 0
    %1082 = vmatmul.mubr.bf16.gmra.mxu0 %v963
    %v1083 = vpop.f32.mrf.mxu0
    %v1084 = vadd.f32 %v796, %v1083
    %v1085 = vpop.f32.mrf.mxu0
    %v1086 = vadd.f32 %v796, %v1085
    %v1087 = vpop.f32.mrf.mxu0
    %v1088 = vadd.f32 %v801, %v1087
    %v1089 = vpop.f32.mrf.mxu0
    %v1090 = vadd.f32 %v801, %v1089
    %1091 = vmatprep.mubr.bf16.mxu0 0
    %1092 = vmatmul.mubr.bf16.gmra.mxu0 %v964
    %v1093 = vpop.f32.mrf.mxu0
    %v1094 = vadd.f32 %v806, %v1093
    %v1095 = vpop.f32.mrf.mxu0
    %v1096 = vadd.f32 %v806, %v1095
    %v1097 = vpop.f32.mrf.mxu0
    %v1098 = vadd.f32 %v811, %v1097
    %v1099 = vpop.f32.mrf.mxu0
    %v1100 = vadd.f32 %v811, %v1099
    %1101 = vmatprep.mubr.bf16.mxu0 0
    %1102 = vmatmul.mubr.bf16.gmra.mxu0 %v965
    %v1103 = vpop.f32.mrf.mxu0
    %v1104 = vadd.f32 %v816, %v1103
    %v1105 = vpop.f32.mrf.mxu0
    %v1106 = vadd.f32 %v816, %v1105
    %v1107 = vpop.f32.mrf.mxu0
    %v1108 = vadd.f32 %v821, %v1107
    %v1109 = vpop.f32.mrf.mxu0
    %v1110 = vadd.f32 %v821, %v1109
    %1111 = vmatprep.mubr.bf16.mxu0 0
    %1112 = vmatmul.mubr.bf16.gmra.mxu0 %v966
    %v1113 = vpop.f32.mrf.mxu0
    %v1114 = vadd.f32 %v826, %v1113
    %v1115 = vpop.f32.mrf.mxu0
    %v1116 = vadd.f32 %v826, %v1115
    %v1117 = vpop.f32.mrf.mxu0
    %v1118 = vadd.f32 %v831, %v1117
    %v1119 = vpop.f32.mrf.mxu0
    %v1120 = vadd.f32 %v831, %v1119
    %1121 = vmatprep.mubr.bf16.mxu0 0
    %1122 = vmatmul.mubr.bf16.gmra.mxu0 %v967
    %v1123 = vpop.f32.mrf.mxu0
    %v1124 = vadd.f32 %v836, %v1123
    %v1125 = vpop.f32.mrf.mxu0
    %v1126 = vadd.f32 %v836, %v1125
    %v1127 = vpop.f32.mrf.mxu0
    %v1128 = vadd.f32 %v841, %v1127
    %v1129 = vpop.f32.mrf.mxu0
    %v1130 = vadd.f32 %v841, %v1129
    %1131 = vmatprep.mubr.bf16.mxu0 0
    %1132 = vmatmul.mubr.bf16.gmra.mxu0 %v968
    %v1133 = vpop.f32.mrf.mxu0
    %v1134 = vadd.f32 %v846, %v1133
    %v1135 = vpop.f32.mrf.mxu0
    %v1136 = vadd.f32 %v846, %v1135
    %v1137 = vpop.f32.mrf.mxu0
    %v1138 = vadd.f32 %v851, %v1137
    %v1139 = vpop.f32.mrf.mxu0
    %v1140 = vadd.f32 %v851, %v1139
    %1141 = vmatprep.mubr.bf16.mxu0 0
    %1142 = vmatmul.mubr.bf16.gmra.mxu0 %v969
    %v1143 = vpop.f32.mrf.mxu0
    %v1144 = vadd.f32 %v856, %v1143
    %v1145 = vpop.f32.mrf.mxu0
    %v1146 = vadd.f32 %v856, %v1145
    %v1147 = vpop.f32.mrf.mxu0
    %v1148 = vadd.f32 %v861, %v1147
    %v1149 = vpop.f32.mrf.mxu0
    %v1150 = vadd.f32 %v861, %v1149
    %1151 = vmatprep.mubr.bf16.mxu0 0
    %1152 = vmatmul.mubr.bf16.gmra.mxu0 %v970
    %v1153 = vpop.f32.mrf.mxu0
    %v1154 = vadd.f32 %v866, %v1153
    %v1155 = vpop.f32.mrf.mxu0
    %v1156 = vadd.f32 %v866, %v1155
    %v1157 = vpop.f32.mrf.mxu0
    %v1158 = vadd.f32 %v871, %v1157
    %v1159 = vpop.f32.mrf.mxu0
    %v1160 = vadd.f32 %v871, %v1159
    %1161 = vmatprep.mubr.bf16.mxu0 0
    %1162 = vmatmul.mubr.bf16.gmra.mxu0 %v971
    %v1163 = vpop.f32.mrf.mxu0
    %v1164 = vadd.f32 %v876, %v1163
    %v1165 = vpop.f32.mrf.mxu0
    %v1166 = vadd.f32 %v876, %v1165
    %v1167 = vpop.f32.mrf.mxu0
    %v1168 = vadd.f32 %v881, %v1167
    %v1169 = vpop.f32.mrf.mxu0
    %v1170 = vadd.f32 %v881, %v1169
    %1171 = vmatprep.mubr.bf16.mxu0 0
    %1172 = vmatmul.mubr.bf16.gmra.mxu0 %v972
    %v1173 = vpop.f32.mrf.mxu0
    %v1174 = vadd.f32 %v886, %v1173
    %v1175 = vpop.f32.mrf.mxu0
    %v1176 = vadd.f32 %v886, %v1175
    %v1177 = vpop.f32.mrf.mxu0
    %v1178 = vadd.f32 %v891, %v1177
    %v1179 = vpop.f32.mrf.mxu0
    %v1180 = vadd.f32 %v891, %v1179
    %1181 = vdwg.mxu0
    %v1182 = vmax.f32 %v1024, 0.0
    %v1183 = vmax.f32 %v1026, 0.0
    %v1184 = vmax.f32 %v1028, 0.0
    %v1185 = vmax.f32 %v1030, 0.0
    %v1186 = vmax.f32 %v1034, 0.0
    %v1187 = vmax.f32 %v1036, 0.0
    %v1188 = vmax.f32 %v1038, 0.0
    %v1189 = vmax.f32 %v1040, 0.0
    %v1190 = vmax.f32 %v1044, 0.0
    %v1191 = vmax.f32 %v1046, 0.0
    %v1192 = vmax.f32 %v1048, 0.0
    %v1193 = vmax.f32 %v1050, 0.0
    %v1194 = vmax.f32 %v1054, 0.0
    %v1195 = vmax.f32 %v1056, 0.0
    %v1196 = vmax.f32 %v1058, 0.0
    %v1197 = vmax.f32 %v1060, 0.0
    %v1198 = vmax.f32 %v1064, 0.0
    %v1199 = vmax.f32 %v1066, 0.0
    %v1200 = vmax.f32 %v1068, 0.0
    %v1201 = vmax.f32 %v1070, 0.0
    %v1202 = vmax.f32 %v1074, 0.0
    %v1203 = vmax.f32 %v1076, 0.0
    %v1204 = vmax.f32 %v1078, 0.0
    %v1205 = vmax.f32 %v1080, 0.0
    %v1206 = vmax.f32 %v1084, 0.0
    %v1207 = vmax.f32 %v1086, 0.0
    %v1208 = vmax.f32 %v1088, 0.0
    %v1209 = vmax.f32 %v1090, 0.0
    %v1210 = vmax.f32 %v1094, 0.0
    %v1211 = vmax.f32 %v1096, 0.0
    %v1212 = vmax.f32 %v1098, 0.0
    %v1213 = vmax.f32 %v1100, 0.0
    %v1214 = vmax.f32 %v1104, 0.0
    %v1215 = vmax.f32 %v1106, 0.0
    %v1216 = vmax.f32 %v1108, 0.0
    %v1217 = vmax.f32 %v1110, 0.0
    %v1218 = vmax.f32 %v1114, 0.0
    %v1219 = vmax.f32 %v1116, 0.0
    %v1220 = vmax.f32 %v1118, 0.0
    %v1221 = vmax.f32 %v1120, 0.0
    %v1222 = vmax.f32 %v1124, 0.0
    %v1223 = vmax.f32 %v1126, 0.0
    %v1224 = vmax.f32 %v1128, 0.0
    %v1225 = vmax.f32 %v1130, 0.0
    %v1226 = vmax.f32 %v1134, 0.0
    %v1227 = vmax.f32 %v1136, 0.0
    %v1228 = vmax.f32 %v1138, 0.0
    %v1229 = vmax.f32 %v1140, 0.0
    %v1230 = vmax.f32 %v1144, 0.0
    %v1231 = vmax.f32 %v1146, 0.0
    %v1232 = vmax.f32 %v1148, 0.0
    %v1233 = vmax.f32 %v1150, 0.0
    %v1234 = vmax.f32 %v1154, 0.0
    %v1235 = vmax.f32 %v1156, 0.0
    %v1236 = vmax.f32 %v1158, 0.0
    %v1237 = vmax.f32 %v1160, 0.0
    %v1238 = vmax.f32 %v1164, 0.0
    %v1239 = vmax.f32 %v1166, 0.0
    %v1240 = vmax.f32 %v1168, 0.0
    %v1241 = vmax.f32 %v1170, 0.0
    %v1242 = vmax.f32 %v1174, 0.0
    %v1243 = vmax.f32 %v1176, 0.0
    %v1244 = vmax.f32 %v1178, 0.0
    %v1245 = vmax.f32 %v1180, 0.0
    %v1246 = vpack.c.bf16 %v1184, %v1182
    %v1247 = vpack.c.bf16 %v1185, %v1183
    %v1248 = vpack.c.bf16 %v1188, %v1186
    %v1249 = vpack.c.bf16 %v1189, %v1187
    %v1250 = vpack.c.bf16 %v1192, %v1190
    %v1251 = vpack.c.bf16 %v1193, %v1191
    %v1252 = vpack.c.bf16 %v1196, %v1194
    %v1253 = vpack.c.bf16 %v1197, %v1195
    %v1254 = vpack.c.bf16 %v1200, %v1198
    %v1255 = vpack.c.bf16 %v1201, %v1199
    %v1256 = vpack.c.bf16 %v1204, %v1202
    %v1257 = vpack.c.bf16 %v1205, %v1203
    %v1258 = vpack.c.bf16 %v1208, %v1206
    %v1259 = vpack.c.bf16 %v1209, %v1207
    %v1260 = vpack.c.bf16 %v1212, %v1210
    %v1261 = vpack.c.bf16 %v1213, %v1211
    %v1262 = vpack.c.bf16 %v1216, %v1214
    %v1263 = vpack.c.bf16 %v1217, %v1215
    %v1264 = vpack.c.bf16 %v1220, %v1218
    %v1265 = vpack.c.bf16 %v1221, %v1219
    %v1266 = vpack.c.bf16 %v1224, %v1222
    %v1267 = vpack.c.bf16 %v1225, %v1223
    %v1268 = vpack.c.bf16 %v1228, %v1226
    %v1269 = vpack.c.bf16 %v1229, %v1227
    %v1270 = vpack.c.bf16 %v1232, %v1230
    %v1271 = vpack.c.bf16 %v1233, %v1231
    %v1272 = vpack.c.bf16 %v1236, %v1234
    %v1273 = vpack.c.bf16 %v1237, %v1235
    %v1274 = vpack.c.bf16 %v1240, %v1238
    %v1275 = vpack.c.bf16 %v1241, %v1239
    %v1276 = vpack.c.bf16 %v1244, %v1242
    %v1277 = vpack.c.bf16 %v1245, %v1243
    %v1278 = vld [vmem:[%s9] sm:$0xff]
    %v1279 = vld [vmem:[%s9 + $0x8] sm:$0xff]
    %v1280 = vld [vmem:[%s9 + $0x10] sm:$0xff]
    %v1281 = vld [vmem:[%s9 + $0x18] sm:$0xff]
    %v1282 = vld [vmem:[%s9 + $0x20] sm:$0xff]
    %v1283 = vld [vmem:[%s9 + $0x28] sm:$0xff]
    %v1284 = vld [vmem:[%s9 + $0x30] sm:$0xff]
    %v1285 = vld [vmem:[%s9 + $0x38] sm:$0xff]
    %v1286 = vld [vmem:[%s9 + $0x40] sm:$0xff]
    %v1287 = vld [vmem:[%s9 + $0x48] sm:$0xff]
    %v1288 = vld [vmem:[%s9 + $0x50] sm:$0xff]
    %v1289 = vld [vmem:[%s9 + $0x58] sm:$0xff]
    %v1290 = vld [vmem:[%s9 + $0x60] sm:$0xff]
    %v1291 = vld [vmem:[%s9 + $0x68] sm:$0xff]
    %v1292 = vld [vmem:[%s9 + $0x70] sm:$0xff]
    %v1293 = vld [vmem:[%s9 + $0x78] sm:$0xff]
    %v1294 = vld [vmem:[%s10] sm:$0xff]
    %v1295 = vld [vmem:[%s10 + $0x8] sm:$0xff]
    %v1296 = vld [vmem:[%s10 + $0x10] sm:$0xff]
    %v1297 = vld [vmem:[%s10 + $0x18] sm:$0xff]
    %v1298 = vld [vmem:[%s10 + $0x20] sm:$0xff]
    %v1299 = vld [vmem:[%s10 + $0x28] sm:$0xff]
    %v1300 = vld [vmem:[%s10 + $0x30] sm:$0xff]
    %v1301 = vld [vmem:[%s10 + $0x38] sm:$0xff]
    %v1302 = vld [vmem:[%s10 + $0x40] sm:$0xff]
    %v1303 = vld [vmem:[%s10 + $0x48] sm:$0xff]
    %v1304 = vld [vmem:[%s10 + $0x50] sm:$0xff]
    %v1305 = vld [vmem:[%s10 + $0x58] sm:$0xff]
    %v1306 = vld [vmem:[%s10 + $0x60] sm:$0xff]
    %v1307 = vld [vmem:[%s10 + $0x68] sm:$0xff]
    %v1308 = vld [vmem:[%s10 + $0x70] sm:$0xff]
    %v1309 = vld [vmem:[%s10 + $0x78] sm:$0xff]
    %1311 = vset.pattern.permute.xlu0 0
    %1312 = vperm.xlu0 %1311, %v1294
    %v1313 = vpop.permute.xlu0 %1312
    %1316 = vset.pattern.permute.xlu0 0
    %1317 = vperm.xlu0 %1316, %v1295
    %v1318 = vpop.permute.xlu0 %1317
    %1321 = vset.pattern.permute.xlu0 0
    %1322 = vperm.xlu0 %1321, %v1296
    %v1323 = vpop.permute.xlu0 %1322
    %1326 = vset.pattern.permute.xlu0 0
    %1327 = vperm.xlu0 %1326, %v1297
    %v1328 = vpop.permute.xlu0 %1327
    %1331 = vset.pattern.permute.xlu0 0
    %1332 = vperm.xlu0 %1331, %v1298
    %v1333 = vpop.permute.xlu0 %1332
    %1336 = vset.pattern.permute.xlu0 0
    %1337 = vperm.xlu0 %1336, %v1299
    %v1338 = vpop.permute.xlu0 %1337
    %1341 = vset.pattern.permute.xlu0 0
    %1342 = vperm.xlu0 %1341, %v1300
    %v1343 = vpop.permute.xlu0 %1342
    %1346 = vset.pattern.permute.xlu0 0
    %1347 = vperm.xlu0 %1346, %v1301
    %v1348 = vpop.permute.xlu0 %1347
    %1351 = vset.pattern.permute.xlu0 0
    %1352 = vperm.xlu0 %1351, %v1302
    %v1353 = vpop.permute.xlu0 %1352
    %1356 = vset.pattern.permute.xlu0 0
    %1357 = vperm.xlu0 %1356, %v1303
    %v1358 = vpop.permute.xlu0 %1357
    %1361 = vset.pattern.permute.xlu0 0
    %1362 = vperm.xlu0 %1361, %v1304
    %v1363 = vpop.permute.xlu0 %1362
    %1366 = vset.pattern.permute.xlu0 0
    %1367 = vperm.xlu0 %1366, %v1305
    %v1368 = vpop.permute.xlu0 %1367
    %1371 = vset.pattern.permute.xlu0 0
    %1372 = vperm.xlu0 %1371, %v1306
    %v1373 = vpop.permute.xlu0 %1372
    %1376 = vset.pattern.permute.xlu0 0
    %1377 = vperm.xlu0 %1376, %v1307
    %v1378 = vpop.permute.xlu0 %1377
    %1381 = vset.pattern.permute.xlu0 0
    %1382 = vperm.xlu0 %1381, %v1308
    %v1383 = vpop.permute.xlu0 %1382
    %1386 = vset.pattern.permute.xlu0 0
    %1387 = vperm.xlu0 %1386, %v1309
    %v1388 = vpop.permute.xlu0 %1387
    %v1406 = vunpack.c.l.b16 %v1278
    %v1407 = vunpack.c.h.b16 %v1278
    %v1408 = vunpack.c.l.b16 %v1279
    %v1409 = vunpack.c.h.b16 %v1279
    %v1410 = vunpack.c.l.b16 %v1280
    %v1411 = vunpack.c.h.b16 %v1280
    %v1412 = vunpack.c.l.b16 %v1281
    %v1413 = vunpack.c.h.b16 %v1281
    %v1414 = vunpack.c.l.b16 %v1282
    %v1415 = vunpack.c.h.b16 %v1282
    %v1416 = vunpack.c.l.b16 %v1283
    %v1417 = vunpack.c.h.b16 %v1283
    %v1418 = vunpack.c.l.b16 %v1284
    %v1419 = vunpack.c.h.b16 %v1284
    %v1420 = vunpack.c.l.b16 %v1285
    %v1421 = vunpack.c.h.b16 %v1285
    %v1422 = vunpack.c.l.b16 %v1286
    %v1423 = vunpack.c.h.b16 %v1286
    %v1424 = vunpack.c.l.b16 %v1287
    %v1425 = vunpack.c.h.b16 %v1287
    %v1426 = vunpack.c.l.b16 %v1288
    %v1427 = vunpack.c.h.b16 %v1288
    %v1428 = vunpack.c.l.b16 %v1289
    %v1429 = vunpack.c.h.b16 %v1289
    %v1430 = vunpack.c.l.b16 %v1290
    %v1431 = vunpack.c.h.b16 %v1290
    %v1432 = vunpack.c.l.b16 %v1291
    %v1433 = vunpack.c.h.b16 %v1291
    %v1434 = vunpack.c.l.b16 %v1292
    %v1435 = vunpack.c.h.b16 %v1292
    %v1436 = vunpack.c.l.b16 %v1293
    %v1437 = vunpack.c.h.b16 %v1293
    %v1438 = vpack.c.b16 %v1408, %v1406
    %v1439 = vpack.c.b16 %v1409, %v1407
    %v1440 = vpack.c.b16 %v1412, %v1410
    %v1441 = vpack.c.b16 %v1413, %v1411
    %v1442 = vpack.c.b16 %v1416, %v1414
    %v1443 = vpack.c.b16 %v1417, %v1415
    %v1444 = vpack.c.b16 %v1420, %v1418
    %v1445 = vpack.c.b16 %v1421, %v1419
    %v1446 = vpack.c.b16 %v1424, %v1422
    %v1447 = vpack.c.b16 %v1425, %v1423
    %v1448 = vpack.c.b16 %v1428, %v1426
    %v1449 = vpack.c.b16 %v1429, %v1427
    %v1450 = vpack.c.b16 %v1432, %v1430
    %v1451 = vpack.c.b16 %v1433, %v1431
    %v1452 = vpack.c.b16 %v1436, %v1434
    %v1453 = vpack.c.b16 %v1437, %v1435
    %1470 = vmatprep.subr.bf16.mxu0 %v1261
    %1471 = vmatpush1.bf16.msra.mxu0 %v1260
    %1472 = vmatprep.subr.bf16.mxu0 %v1259
    %1473 = vmatpush1.bf16.msra.mxu0 %v1258
    %1474 = vmatprep.subr.bf16.mxu0 %v1257
    %1475 = vmatpush1.bf16.msra.mxu0 %v1256
    %1476 = vmatprep.subr.bf16.mxu0 %v1255
    %1477 = vmatpush1.bf16.msra.mxu0 %v1254
    %1478 = vmatprep.subr.bf16.mxu0 %v1253
    %1479 = vmatpush1.bf16.msra.mxu0 %v1252
    %1480 = vmatprep.subr.bf16.mxu0 %v1251
    %1481 = vmatpush1.bf16.msra.mxu0 %v1250
    %1482 = vmatprep.subr.bf16.mxu0 %v1249
    %1483 = vmatpush1.bf16.msra.mxu0 %v1248
    %1484 = vmatprep.subr.bf16.mxu0 %v1247
    %1485 = vmatpush1.bf16.msra.mxu0 %v1246
    %1486 = vmatprep.subr.bf16.mxu0 %v1277
    %1487 = vmatpush2.bf16.msra.mxu0 %v1276
    %1488 = vmatprep.subr.bf16.mxu0 %v1275
    %1489 = vmatpush2.bf16.msra.mxu0 %v1274
    %1490 = vmatprep.subr.bf16.mxu0 %v1273
    %1491 = vmatpush2.bf16.msra.mxu0 %v1272
    %1492 = vmatprep.subr.bf16.mxu0 %v1271
    %1493 = vmatpush2.bf16.msra.mxu0 %v1270
    %1494 = vmatprep.subr.bf16.mxu0 %v1269
    %1495 = vmatpush2.bf16.msra.mxu0 %v1268
    %1496 = vmatprep.subr.bf16.mxu0 %v1267
    %1497 = vmatpush2.bf16.msra.mxu0 %v1266
    %1498 = vmatprep.subr.bf16.mxu0 %v1265
    %1499 = vmatpush2.bf16.msra.mxu0 %v1264
    %1500 = vmatprep.subr.bf16.mxu0 %v1263
    %1501 = vmatpush2.bf16.msra.mxu0 %v1262
    %1502 = vmatprep.mubr.bf16.mxu0 %v1439
    %1503 = vmatmul.mubr.bf16.gmra.mxu0 %v1438
    %v1504 = vpop.f32.mrf.mxu0
    %v1505 = vadd.f32 %v1313, %v1504
    %v1506 = vpop.f32.mrf.mxu0
    %v1507 = vadd.f32 %v1313, %v1506
    %v1508 = vpop.f32.mrf.mxu0
    %v1509 = vadd.f32 %v1318, %v1508
    %v1510 = vpop.f32.mrf.mxu0
    %v1511 = vadd.f32 %v1318, %v1510
    %1512 = vmatprep.mubr.bf16.mxu0 %v1441
    %1513 = vmatmul.mubr.bf16.gmra.mxu0 %v1440
    %v1514 = vpop.f32.mrf.mxu0
    %v1515 = vadd.f32 %v1323, %v1514
    %v1516 = vpop.f32.mrf.mxu0
    %v1517 = vadd.f32 %v1323, %v1516
    %v1518 = vpop.f32.mrf.mxu0
    %v1519 = vadd.f32 %v1328, %v1518
    %v1520 = vpop.f32.mrf.mxu0
    %v1521 = vadd.f32 %v1328, %v1520
    %1522 = vmatprep.mubr.bf16.mxu0 %v1443
    %1523 = vmatmul.mubr.bf16.gmra.mxu0 %v1442
    %v1524 = vpop.f32.mrf.mxu0
    %v1525 = vadd.f32 %v1333, %v1524
    %v1526 = vpop.f32.mrf.mxu0
    %v1527 = vadd.f32 %v1333, %v1526
    %v1528 = vpop.f32.mrf.mxu0
    %v1529 = vadd.f32 %v1338, %v1528
    %v1530 = vpop.f32.mrf.mxu0
    %v1531 = vadd.f32 %v1338, %v1530
    %1532 = vmatprep.mubr.bf16.mxu0 %v1445
    %1533 = vmatmul.mubr.bf16.gmra.mxu0 %v1444
    %v1534 = vpop.f32.mrf.mxu0
    %v1535 = vadd.f32 %v1343, %v1534
    %v1536 = vpop.f32.mrf.mxu0
    %v1537 = vadd.f32 %v1343, %v1536
    %v1538 = vpop.f32.mrf.mxu0
    %v1539 = vadd.f32 %v1348, %v1538
    %v1540 = vpop.f32.mrf.mxu0
    %v1541 = vadd.f32 %v1348, %v1540
    %1542 = vmatprep.mubr.bf16.mxu0 %v1447
    %1543 = vmatmul.mubr.bf16.gmra.mxu0 %v1446
    %v1544 = vpop.f32.mrf.mxu0
    %v1545 = vadd.f32 %v1353, %v1544
    %v1546 = vpop.f32.mrf.mxu0
    %v1547 = vadd.f32 %v1353, %v1546
    %v1548 = vpop.f32.mrf.mxu0
    %v1549 = vadd.f32 %v1358, %v1548
    %v1550 = vpop.f32.mrf.mxu0
    %v1551 = vadd.f32 %v1358, %v1550
    %1552 = vmatprep.mubr.bf16.mxu0 %v1449
    %1553 = vmatmul.mubr.bf16.gmra.mxu0 %v1448
    %v1554 = vpop.f32.mrf.mxu0
    %v1555 = vadd.f32 %v1363, %v1554
    %v1556 = vpop.f32.mrf.mxu0
    %v1557 = vadd.f32 %v1363, %v1556
    %v1558 = vpop.f32.mrf.mxu0
    %v1559 = vadd.f32 %v1368, %v1558
    %v1560 = vpop.f32.mrf.mxu0
    %v1561 = vadd.f32 %v1368, %v1560
    %1562 = vmatprep.mubr.bf16.mxu0 %v1451
    %1563 = vmatmul.mubr.bf16.gmra.mxu0 %v1450
    %v1564 = vpop.f32.mrf.mxu0
    %v1565 = vadd.f32 %v1373, %v1564
    %v1566 = vpop.f32.mrf.mxu0
    %v1567 = vadd.f32 %v1373, %v1566
    %v1568 = vpop.f32.mrf.mxu0
    %v1569 = vadd.f32 %v1378, %v1568
    %v1570 = vpop.f32.mrf.mxu0
    %v1571 = vadd.f32 %v1378, %v1570
    %1572 = vmatprep.mubr.bf16.mxu0 %v1453
    %1573 = vmatmul.mubr.bf16.gmra.mxu0 %v1452
    %v1574 = vpop.f32.mrf.mxu0
    %v1575 = vadd.f32 %v1383, %v1574
    %v1576 = vpop.f32.mrf.mxu0
    %v1577 = vadd.f32 %v1383, %v1576
    %v1578 = vpop.f32.mrf.mxu0
    %v1579 = vadd.f32 %v1388, %v1578
    %v1580 = vpop.f32.mrf.mxu0
    %v1581 = vadd.f32 %v1388, %v1580
    %1582 = vdwg.mxu0
    %v1583 = vmax.f32 %v1505, 0.0
    %v1584 = vmax.f32 %v1507, 0.0
    %v1585 = vmax.f32 %v1509, 0.0
    %v1586 = vmax.f32 %v1511, 0.0
    %v1587 = vmax.f32 %v1515, 0.0
    %v1588 = vmax.f32 %v1517, 0.0
    %v1589 = vmax.f32 %v1519, 0.0
    %v1590 = vmax.f32 %v1521, 0.0
    %v1591 = vmax.f32 %v1525, 0.0
    %v1592 = vmax.f32 %v1527, 0.0
    %v1593 = vmax.f32 %v1529, 0.0
    %v1594 = vmax.f32 %v1531, 0.0
    %v1595 = vmax.f32 %v1535, 0.0
    %v1596 = vmax.f32 %v1537, 0.0
    %v1597 = vmax.f32 %v1539, 0.0
    %v1598 = vmax.f32 %v1541, 0.0
    %v1599 = vmax.f32 %v1545, 0.0
    %v1600 = vmax.f32 %v1547, 0.0
    %v1601 = vmax.f32 %v1549, 0.0
    %v1602 = vmax.f32 %v1551, 0.0
    %v1603 = vmax.f32 %v1555, 0.0
    %v1604 = vmax.f32 %v1557, 0.0
    %v1605 = vmax.f32 %v1559, 0.0
    %v1606 = vmax.f32 %v1561, 0.0
    %v1607 = vmax.f32 %v1565, 0.0
    %v1608 = vmax.f32 %v1567, 0.0
    %v1609 = vmax.f32 %v1569, 0.0
    %v1610 = vmax.f32 %v1571, 0.0
    %v1611 = vmax.f32 %v1575, 0.0
    %v1612 = vmax.f32 %v1577, 0.0
    %v1613 = vmax.f32 %v1579, 0.0
    %v1614 = vmax.f32 %v1581, 0.0
    %v1615 = vpack.c.bf16 %v1585, %v1583
    %v1616 = vpack.c.bf16 %v1586, %v1584
    %v1617 = vpack.c.bf16 %v1589, %v1587
    %v1618 = vpack.c.bf16 %v1590, %v1588
    %v1619 = vpack.c.bf16 %v1593, %v1591
    %v1620 = vpack.c.bf16 %v1594, %v1592
    %v1621 = vpack.c.bf16 %v1597, %v1595
    %v1622 = vpack.c.bf16 %v1598, %v1596
    %v1623 = vpack.c.bf16 %v1601, %v1599
    %v1624 = vpack.c.bf16 %v1602, %v1600
    %v1625 = vpack.c.bf16 %v1605, %v1603
    %v1626 = vpack.c.bf16 %v1606, %v1604
    %v1627 = vpack.c.bf16 %v1609, %v1607
    %v1628 = vpack.c.bf16 %v1610, %v1608
    %v1629 = vpack.c.bf16 %v1613, %v1611
    %v1630 = vpack.c.bf16 %v1614, %v1612
    %v1631 = vld [vmem:[%s11] sm:$0xf]
    %v1632 = vld [vmem:[%s11 + $0x4] sm:$0xf]
    %v1633 = vld [vmem:[%s11 + $0x8] sm:$0xf]
    %v1634 = vld [vmem:[%s11 + $0xc] sm:$0xf]
    %v1635 = vld [vmem:[%s11 + $0x10] sm:$0xf]
    %v1636 = vld [vmem:[%s11 + $0x14] sm:$0xf]
    %v1637 = vld [vmem:[%s11 + $0x18] sm:$0xf]
    %v1638 = vld [vmem:[%s11 + $0x1c] sm:$0xf]
    %v1639 = vld [vmem:[%s12] sm:$0xf]
    %v1640 = vld [vmem:[%s12 + $0x4] sm:$0xf]
    %v1641 = vld [vmem:[%s12 + $0x8] sm:$0xf]
    %v1642 = vld [vmem:[%s12 + $0xc] sm:$0xf]
    %v1643 = vld [vmem:[%s12 + $0x10] sm:$0xf]
    %v1644 = vld [vmem:[%s12 + $0x14] sm:$0xf]
    %v1645 = vld [vmem:[%s12 + $0x18] sm:$0xf]
    %v1646 = vld [vmem:[%s12 + $0x1c] sm:$0xf]
    %v1655 = vunpack.c.l.b16 %v1639
    %v1656 = vunpack.c.l.b16 %v1640
    %v1657 = vunpack.c.l.b16 %v1641
    %v1658 = vunpack.c.l.b16 %v1642
    %v1659 = vunpack.c.l.b16 %v1643
    %v1660 = vunpack.c.l.b16 %v1644
    %v1661 = vunpack.c.l.b16 %v1645
    %v1662 = vunpack.c.l.b16 %v1646
    %v1663 = vpack.c.b16 %v1656, %v1655
    %v1664 = vpack.c.b16 %v1658, %v1657
    %v1665 = vpack.c.b16 %v1660, %v1659
    %v1666 = vpack.c.b16 %v1662, %v1661
    %1671 = vmatprep.subr.bf16.mxu0 %v1630
    %1672 = vmatpush1.bf16.msra.mxu0 %v1629
    %1673 = vmatprep.subr.bf16.mxu0 %v1628
    %1674 = vmatpush1.bf16.msra.mxu0 %v1627
    %1675 = vmatprep.subr.bf16.mxu0 %v1626
    %1676 = vmatpush1.bf16.msra.mxu0 %v1625
    %1677 = vmatprep.subr.bf16.mxu0 %v1624
    %1678 = vmatpush1.bf16.msra.mxu0 %v1623
    %1679 = vmatprep.subr.bf16.mxu0 %v1622
    %1680 = vmatpush1.bf16.msra.mxu0 %v1621
    %1681 = vmatprep.subr.bf16.mxu0 %v1620
    %1682 = vmatpush1.bf16.msra.mxu0 %v1619
    %1683 = vmatprep.subr.bf16.mxu0 %v1618
    %1684 = vmatpush1.bf16.msra.mxu0 %v1617
    %1685 = vmatprep.subr.bf16.mxu0 %v1616
    %1686 = vmatpush1.bf16.msra.mxu0 %v1615
    %1687 = vmatprep.subr.bf16.mxu0 0
    %1688 = vmatpush2.bf16.msra.mxu0 0
    %1689 = vmatprep.subr.bf16.mxu0 0
    %1690 = vmatpush2.bf16.msra.mxu0 0
    %1691 = vmatprep.subr.bf16.mxu0 0
    %1692 = vmatpush2.bf16.msra.mxu0 0
    %1693 = vmatprep.subr.bf16.mxu0 0
    %1694 = vmatpush2.bf16.msra.mxu0 0
    %1695 = vmatprep.subr.bf16.mxu0 0
    %1696 = vmatpush2.bf16.msra.mxu0 0
    %1697 = vmatprep.subr.bf16.mxu0 0
    %1698 = vmatpush2.bf16.msra.mxu0 0
    %1699 = vmatprep.subr.bf16.mxu0 0
    %1700 = vmatpush2.bf16.msra.mxu0 0
    %1701 = vmatprep.subr.bf16.mxu0 0
    %1702 = vmatpush2.bf16.msra.mxu0 0
    %1703 = vmatprep.mubr.bf16.mxu0 0
    %1704 = vmatmul.mubr.bf16.gmra.mxu0 %v1663
    %v1705 = vpop.f32.mrf.mxu0
    %v1706 = vadd.f32 0.0, %v1705
    %v1707 = vpop.f32.mrf.mxu0
    %v1708 = vadd.f32 0.0, %v1707
    %v1709 = vpop.f32.mrf.mxu0
    %v1710 = vadd.f32 0.0, %v1709
    %v1711 = vpop.f32.mrf.mxu0
    %v1712 = vadd.f32 0.0, %v1711
    %1713 = vmatprep.mubr.bf16.mxu0 0
    %1714 = vmatmul.mubr.bf16.gmra.mxu0 %v1664
    %v1715 = vpop.f32.mrf.mxu0
    %v1716 = vadd.f32 0.0, %v1715
    %v1717 = vpop.f32.mrf.mxu0
    %v1718 = vadd.f32 0.0, %v1717
    %v1719 = vpop.f32.mrf.mxu0
    %v1720 = vadd.f32 0.0, %v1719
    %v1721 = vpop.f32.mrf.mxu0
    %v1722 = vadd.f32 0.0, %v1721
    %1723 = vmatprep.mubr.bf16.mxu0 0
    %1724 = vmatmul.mubr.bf16.gmra.mxu0 %v1665
    %v1725 = vpop.f32.mrf.mxu0
    %v1726 = vadd.f32 0.0, %v1725
    %v1727 = vpop.f32.mrf.mxu0
    %v1728 = vadd.f32 0.0, %v1727
    %v1729 = vpop.f32.mrf.mxu0
    %v1730 = vadd.f32 0.0, %v1729
    %v1731 = vpop.f32.mrf.mxu0
    %v1732 = vadd.f32 0.0, %v1731
    %1733 = vmatprep.mubr.bf16.mxu0 0
    %1734 = vmatmul.mubr.bf16.gmra.mxu0 %v1666
    %v1735 = vpop.f32.mrf.mxu0
    %v1736 = vadd.f32 0.0, %v1735
    %v1737 = vpop.f32.mrf.mxu0
    %v1738 = vadd.f32 0.0, %v1737
    %v1739 = vpop.f32.mrf.mxu0
    %v1740 = vadd.f32 0.0, %v1739
    %v1741 = vpop.f32.mrf.mxu0
    %v1742 = vadd.f32 0.0, %v1741
    %1743 = vdwg.mxu0
    %v1752 = vunpack.c.l.b16 %v1631
    %v1753 = vunpack.c.l.b16 %v1632
    %v1754 = vunpack.c.l.b16 %v1633
    %v1755 = vunpack.c.l.b16 %v1634
    %v1756 = vunpack.c.l.b16 %v1635
    %v1757 = vunpack.c.l.b16 %v1636
    %v1758 = vunpack.c.l.b16 %v1637
    %v1759 = vunpack.c.l.b16 %v1638
    %v1760 = vpack.c.b16 %v1753, %v1752
    %v1761 = vpack.c.b16 %v1755, %v1754
    %v1762 = vpack.c.b16 %v1757, %v1756
    %v1763 = vpack.c.b16 %v1759, %v1758
    %1768 = vmatprep.subr.bf16.mxu0 %v668
    %1769 = vmatpush1.bf16.msra.mxu0 %v667
    %1770 = vmatprep.subr.bf16.mxu0 %v666
    %1771 = vmatpush1.bf16.msra.mxu0 %v665
    %1772 = vmatprep.subr.bf16.mxu0 %v664
    %1773 = vmatpush1.bf16.msra.mxu0 %v663
    %1774 = vmatprep.subr.bf16.mxu0 %v662
    %1775 = vmatpush1.bf16.msra.mxu0 %v661
    %1776 = vmatprep.subr.bf16.mxu0 %v660
    %1777 = vmatpush1.bf16.msra.mxu0 %v659
    %1778 = vmatprep.subr.bf16.mxu0 %v658
    %1779 = vmatpush1.bf16.msra.mxu0 %v657
    %1780 = vmatprep.subr.bf16.mxu0 %v656
    %1781 = vmatpush1.bf16.msra.mxu0 %v655
    %1782 = vmatprep.subr.bf16.mxu0 %v654
    %1783 = vmatpush1.bf16.msra.mxu0 %v653
    %1784 = vmatprep.subr.bf16.mxu0 0
    %1785 = vmatpush2.bf16.msra.mxu0 0
    %1786 = vmatprep.subr.bf16.mxu0 0
    %1787 = vmatpush2.bf16.msra.mxu0 0
    %1788 = vmatprep.subr.bf16.mxu0 0
    %1789 = vmatpush2.bf16.msra.mxu0 0
    %1790 = vmatprep.subr.bf16.mxu0 0
    %1791 = vmatpush2.bf16.msra.mxu0 0
    %1792 = vmatprep.subr.bf16.mxu0 0
    %1793 = vmatpush2.bf16.msra.mxu0 0
    %1794 = vmatprep.subr.bf16.mxu0 0
    %1795 = vmatpush2.bf16.msra.mxu0 0
    %1796 = vmatprep.subr.bf16.mxu0 0
    %1797 = vmatpush2.bf16.msra.mxu0 0
    %1798 = vmatprep.subr.bf16.mxu0 0
    %1799 = vmatpush2.bf16.msra.mxu0 0
    %1800 = vmatprep.mubr.bf16.mxu0 0
    %1801 = vmatmul.mubr.bf16.gmra.mxu0 %v1760
    %v1802 = vpop.f32.mrf.mxu0
    %v1803 = vadd.f32 %v1706, %v1802
    %v1804 = vpop.f32.mrf.mxu0
    %v1805 = vadd.f32 %v1708, %v1804
    %v1806 = vpop.f32.mrf.mxu0
    %v1807 = vadd.f32 %v1710, %v1806
    %v1808 = vpop.f32.mrf.mxu0
    %v1809 = vadd.f32 %v1712, %v1808
    %1810 = vmatprep.mubr.bf16.mxu0 0
    %1811 = vmatmul.mubr.bf16.gmra.mxu0 %v1761
    %v1812 = vpop.f32.mrf.mxu0
    %v1813 = vadd.f32 %v1716, %v1812
    %v1814 = vpop.f32.mrf.mxu0
    %v1815 = vadd.f32 %v1718, %v1814
    %v1816 = vpop.f32.mrf.mxu0
    %v1817 = vadd.f32 %v1720, %v1816
    %v1818 = vpop.f32.mrf.mxu0
    %v1819 = vadd.f32 %v1722, %v1818
    %1820 = vmatprep.mubr.bf16.mxu0 0
    %1821 = vmatmul.mubr.bf16.gmra.mxu0 %v1762
    %v1822 = vpop.f32.mrf.mxu0
    %v1823 = vadd.f32 %v1726, %v1822
    %v1824 = vpop.f32.mrf.mxu0
    %v1825 = vadd.f32 %v1728, %v1824
    %v1826 = vpop.f32.mrf.mxu0
    %v1827 = vadd.f32 %v1730, %v1826
    %v1828 = vpop.f32.mrf.mxu0
    %v1829 = vadd.f32 %v1732, %v1828
    %1830 = vmatprep.mubr.bf16.mxu0 0
    %1831 = vmatmul.mubr.bf16.gmra.mxu0 %v1763
    %v1832 = vpop.f32.mrf.mxu0
    %v1833 = vadd.f32 %v1736, %v1832
    %v1834 = vpop.f32.mrf.mxu0
    %v1835 = vadd.f32 %v1738, %v1834
    %v1836 = vpop.f32.mrf.mxu0
    %v1837 = vadd.f32 %v1740, %v1836
    %v1838 = vpop.f32.mrf.mxu0
    %v1839 = vadd.f32 %v1742, %v1838
    %1840 = vdwg.mxu0
    %v1841 = vld [vmem:[%s13] sm:$0xff]
    %v1842 = vld [vmem:[%s13 + $0x8] sm:$0xff]
    %v1843 = vld [vmem:[%s13 + $0x10] sm:$0xff]
    %v1844 = vld [vmem:[%s13 + $0x18] sm:$0xff]
    %v1845 = vld [vmem:[%s13 + $0x20] sm:$0xff]
    %v1846 = vld [vmem:[%s13 + $0x28] sm:$0xff]
    %v1847 = vld [vmem:[%s13 + $0x30] sm:$0xff]
    %v1848 = vld [vmem:[%s13 + $0x38] sm:$0xff]
    %1850 = vset.pattern.permute.xlu0 0
    %1851 = vperm.xlu0 %1850, %v1841
    %v1852 = vpop.permute.xlu0 %1851
    %1855 = vset.pattern.permute.xlu0 0
    %1856 = vperm.xlu0 %1855, %v1842
    %v1857 = vpop.permute.xlu0 %1856
    %1860 = vset.pattern.permute.xlu0 0
    %1861 = vperm.xlu0 %1860, %v1843
    %v1862 = vpop.permute.xlu0 %1861
    %1865 = vset.pattern.permute.xlu0 0
    %1866 = vperm.xlu0 %1865, %v1844
    %v1867 = vpop.permute.xlu0 %1866
    %1870 = vset.pattern.permute.xlu0 0
    %1871 = vperm.xlu0 %1870, %v1845
    %v1872 = vpop.permute.xlu0 %1871
    %1875 = vset.pattern.permute.xlu0 0
    %1876 = vperm.xlu0 %1875, %v1846
    %v1877 = vpop.permute.xlu0 %1876
    %1880 = vset.pattern.permute.xlu0 0
    %1881 = vperm.xlu0 %1880, %v1847
    %v1882 = vpop.permute.xlu0 %1881
    %1885 = vset.pattern.permute.xlu0 0
    %1886 = vperm.xlu0 %1885, %v1848
    %v1887 = vpop.permute.xlu0 %1886
    %v1889 = vadd.f32 %v1803, %v1852
    %v1890 = vadd.f32 %v1805, %v1852
    %v1891 = vadd.f32 %v1807, %v1857
    %v1892 = vadd.f32 %v1809, %v1857
    %v1893 = vadd.f32 %v1813, %v1862
    %v1894 = vadd.f32 %v1815, %v1862
    %v1895 = vadd.f32 %v1817, %v1867
    %v1896 = vadd.f32 %v1819, %v1867
    %v1897 = vadd.f32 %v1823, %v1872
    %v1898 = vadd.f32 %v1825, %v1872
    %v1899 = vadd.f32 %v1827, %v1877
    %v1900 = vadd.f32 %v1829, %v1877
    %v1901 = vadd.f32 %v1833, %v1882
    %v1902 = vadd.f32 %v1835, %v1882
    %v1903 = vadd.f32 %v1837, %v1887
    %v1904 = vadd.f32 %v1839, %v1887
    %v1905 = vmax.f32 %v1889, 0.0
    %v1906 = vmax.f32 %v1890, 0.0
    %v1907 = vmax.f32 %v1891, 0.0
    %v1908 = vmax.f32 %v1892, 0.0
    %v1909 = vmax.f32 %v1893, 0.0
    %v1910 = vmax.f32 %v1894, 0.0
    %v1911 = vmax.f32 %v1895, 0.0
    %v1912 = vmax.f32 %v1896, 0.0
    %v1913 = vmax.f32 %v1897, 0.0
    %v1914 = vmax.f32 %v1898, 0.0
    %v1915 = vmax.f32 %v1899, 0.0
    %v1916 = vmax.f32 %v1900, 0.0
    %v1917 = vmax.f32 %v1901, 0.0
    %v1918 = vmax.f32 %v1902, 0.0
    %v1919 = vmax.f32 %v1903, 0.0
    %v1920 = vmax.f32 %v1904, 0.0
    %v1921 = vpack.c.bf16 %v1907, %v1905
    %v1922 = vpack.c.bf16 %v1908, %v1906
    %v1923 = vpack.c.bf16 %v1911, %v1909
    %v1924 = vpack.c.bf16 %v1912, %v1910
    %v1925 = vpack.c.bf16 %v1915, %v1913
    %v1926 = vpack.c.bf16 %v1916, %v1914
    %v1927 = vpack.c.bf16 %v1919, %v1917
    %v1928 = vpack.c.bf16 %v1920, %v1918
    %v1929 = vld [vmem:[%s14] sm:$0xf]
    %v1930 = vld [vmem:[%s14 + $0x4] sm:$0xf]
    %v1931 = vld [vmem:[%s14 + $0x8] sm:$0xf]
    %v1932 = vld [vmem:[%s14 + $0xc] sm:$0xf]
    %v1933 = vld [vmem:[%s14 + $0x10] sm:$0xf]
    %v1934 = vld [vmem:[%s14 + $0x14] sm:$0xf]
    %v1935 = vld [vmem:[%s14 + $0x18] sm:$0xf]
    %v1936 = vld [vmem:[%s14 + $0x1c] sm:$0xf]
    %v1937 = vld [vmem:[%s15] sm:$0xf]
    %v1938 = vld [vmem:[%s15 + $0x4] sm:$0xf]
    %v1939 = vld [vmem:[%s15 + $0x8] sm:$0xf]
    %v1940 = vld [vmem:[%s15 + $0xc] sm:$0xf]
    %v1941 = vld [vmem:[%s15 + $0x10] sm:$0xf]
    %v1942 = vld [vmem:[%s15 + $0x14] sm:$0xf]
    %v1943 = vld [vmem:[%s15 + $0x18] sm:$0xf]
    %v1944 = vld [vmem:[%s15 + $0x1c] sm:$0xf]
    %v1953 = vunpack.c.l.b16 %v1937
    %v1954 = vunpack.c.l.b16 %v1938
    %v1955 = vunpack.c.l.b16 %v1939
    %v1956 = vunpack.c.l.b16 %v1940
    %v1957 = vunpack.c.l.b16 %v1941
    %v1958 = vunpack.c.l.b16 %v1942
    %v1959 = vunpack.c.l.b16 %v1943
    %v1960 = vunpack.c.l.b16 %v1944
    %v1961 = vpack.c.b16 %v1954, %v1953
    %v1962 = vpack.c.b16 %v1956, %v1955
    %v1963 = vpack.c.b16 %v1958, %v1957
    %v1964 = vpack.c.b16 %v1960, %v1959
    %v1966 = vsel %vm483, %v1961, 0
    %v1969 = vsel %vm483, %v1962, 0
    %v1972 = vsel %vm483, %v1963, 0
    %v1975 = vsel %vm483, %v1964, 0
    %1977 = vmatprep.subr.bf16.mxu0 0
    %1978 = vmatpush1.bf16.msra.mxu0 0
    %1979 = vmatprep.subr.bf16.mxu0 0
    %1980 = vmatpush1.bf16.msra.mxu0 0
    %1981 = vmatprep.subr.bf16.mxu0 0
    %1982 = vmatpush1.bf16.msra.mxu0 0
    %1983 = vmatprep.subr.bf16.mxu0 0
    %1984 = vmatpush1.bf16.msra.mxu0 0
    %1985 = vmatprep.subr.bf16.mxu0 %v1928
    %1986 = vmatpush1.bf16.msra.mxu0 %v1927
    %1987 = vmatprep.subr.bf16.mxu0 %v1926
    %1988 = vmatpush1.bf16.msra.mxu0 %v1925
    %1989 = vmatprep.subr.bf16.mxu0 %v1924
    %1990 = vmatpush1.bf16.msra.mxu0 %v1923
    %1991 = vmatprep.subr.bf16.mxu0 %v1922
    %1992 = vmatpush1.bf16.msra.mxu0 %v1921
    %1993 = vmatprep.subr.bf16.mxu0 0
    %1994 = vmatpush2.bf16.msra.mxu0 0
    %1995 = vmatprep.subr.bf16.mxu0 0
    %1996 = vmatpush2.bf16.msra.mxu0 0
    %1997 = vmatprep.subr.bf16.mxu0 0
    %1998 = vmatpush2.bf16.msra.mxu0 0
    %1999 = vmatprep.subr.bf16.mxu0 0
    %2000 = vmatpush2.bf16.msra.mxu0 0
    %2001 = vmatprep.subr.bf16.mxu0 0
    %2002 = vmatpush2.bf16.msra.mxu0 0
    %2003 = vmatprep.subr.bf16.mxu0 0
    %2004 = vmatpush2.bf16.msra.mxu0 0
    %2005 = vmatprep.subr.bf16.mxu0 0
    %2006 = vmatpush2.bf16.msra.mxu0 0
    %2007 = vmatprep.subr.bf16.mxu0 0
    %2008 = vmatpush2.bf16.msra.mxu0 0
    %2009 = vmatprep.mubr.bf16.mxu0 0
    %2010 = vmatmul.mubr.bf16.gmra.mxu0 %v1966
    %v2011 = vpop.f32.mrf.mxu0
    %v2012 = vadd.f32 0.0, %v2011
    %v2013 = vpop.f32.mrf.mxu0
    %v2014 = vadd.f32 0.0, %v2013
    %v2015 = vpop.f32.mrf.mxu0
    %v2016 = vadd.f32 0.0, %v2015
    %v2017 = vpop.f32.mrf.mxu0
    %v2018 = vadd.f32 0.0, %v2017
    %2019 = vmatprep.mubr.bf16.mxu0 0
    %2020 = vmatmul.mubr.bf16.gmra.mxu0 %v1969
    %v2021 = vpop.f32.mrf.mxu0
    %v2022 = vadd.f32 0.0, %v2021
    %v2023 = vpop.f32.mrf.mxu0
    %v2024 = vadd.f32 0.0, %v2023
    %v2025 = vpop.f32.mrf.mxu0
    %v2026 = vadd.f32 0.0, %v2025
    %v2027 = vpop.f32.mrf.mxu0
    %v2028 = vadd.f32 0.0, %v2027
    %2029 = vmatprep.mubr.bf16.mxu0 0
    %2030 = vmatmul.mubr.bf16.gmra.mxu0 %v1972
    %v2031 = vpop.f32.mrf.mxu0
    %v2032 = vadd.f32 0.0, %v2031
    %v2033 = vpop.f32.mrf.mxu0
    %v2034 = vadd.f32 0.0, %v2033
    %v2035 = vpop.f32.mrf.mxu0
    %v2036 = vadd.f32 0.0, %v2035
    %v2037 = vpop.f32.mrf.mxu0
    %v2038 = vadd.f32 0.0, %v2037
    %2039 = vmatprep.mubr.bf16.mxu0 0
    %2040 = vmatmul.mubr.bf16.gmra.mxu0 %v1975
    %v2041 = vpop.f32.mrf.mxu0
    %v2042 = vadd.f32 0.0, %v2041
    %v2043 = vpop.f32.mrf.mxu0
    %v2044 = vadd.f32 0.0, %v2043
    %v2045 = vpop.f32.mrf.mxu0
    %v2046 = vadd.f32 0.0, %v2045
    %v2047 = vpop.f32.mrf.mxu0
    %v2048 = vadd.f32 0.0, %v2047
    %2049 = vdwg.mxu0
    %v2058 = vunpack.c.l.b16 %v1929
    %v2059 = vunpack.c.l.b16 %v1930
    %v2060 = vunpack.c.l.b16 %v1931
    %v2061 = vunpack.c.l.b16 %v1932
    %v2062 = vunpack.c.l.b16 %v1933
    %v2063 = vunpack.c.l.b16 %v1934
    %v2064 = vunpack.c.l.b16 %v1935
    %v2065 = vunpack.c.l.b16 %v1936
    %v2066 = vpack.c.b16 %v2059, %v2058
    %v2067 = vpack.c.b16 %v2061, %v2060
    %v2068 = vpack.c.b16 %v2063, %v2062
    %v2069 = vpack.c.b16 %v2065, %v2064
    %v2071 = vsel %vm483, %v2066, 0
    %v2074 = vsel %vm483, %v2067, 0
    %v2077 = vsel %vm483, %v2068, 0
    %v2080 = vsel %vm483, %v2069, 0
    %2082 = vmatprep.subr.bf16.mxu0 0
    %2083 = vmatpush1.bf16.msra.mxu0 0
    %2084 = vmatprep.subr.bf16.mxu0 0
    %2085 = vmatpush1.bf16.msra.mxu0 0
    %2086 = vmatprep.subr.bf16.mxu0 0
    %2087 = vmatpush1.bf16.msra.mxu0 0
    %2088 = vmatprep.subr.bf16.mxu0 0
    %2089 = vmatpush1.bf16.msra.mxu0 0
    %2090 = vmatprep.subr.bf16.mxu0 %v330
    %2091 = vmatpush1.bf16.msra.mxu0 %v329
    %2092 = vmatprep.subr.bf16.mxu0 %v328
    %2093 = vmatpush1.bf16.msra.mxu0 %v327
    %2094 = vmatprep.subr.bf16.mxu0 %v326
    %2095 = vmatpush1.bf16.msra.mxu0 %v325
    %2096 = vmatprep.subr.bf16.mxu0 %v324
    %2097 = vmatpush1.bf16.msra.mxu0 %v323
    %2098 = vmatprep.subr.bf16.mxu0 0
    %2099 = vmatpush2.bf16.msra.mxu0 0
    %2100 = vmatprep.subr.bf16.mxu0 0
    %2101 = vmatpush2.bf16.msra.mxu0 0
    %2102 = vmatprep.subr.bf16.mxu0 0
    %2103 = vmatpush2.bf16.msra.mxu0 0
    %2104 = vmatprep.subr.bf16.mxu0 0
    %2105 = vmatpush2.bf16.msra.mxu0 0
    %2106 = vmatprep.subr.bf16.mxu0 0
    %2107 = vmatpush2.bf16.msra.mxu0 0
    %2108 = vmatprep.subr.bf16.mxu0 0
    %2109 = vmatpush2.bf16.msra.mxu0 0
    %2110 = vmatprep.subr.bf16.mxu0 0
    %2111 = vmatpush2.bf16.msra.mxu0 0
    %2112 = vmatprep.subr.bf16.mxu0 0
    %2113 = vmatpush2.bf16.msra.mxu0 0
    %2114 = vmatprep.mubr.bf16.mxu0 0
    %2115 = vmatmul.mubr.bf16.gmra.mxu0 %v2071
    %v2116 = vpop.f32.mrf.mxu0
    %v2117 = vadd.f32 %v2012, %v2116
    %v2118 = vpop.f32.mrf.mxu0
    %v2119 = vadd.f32 %v2014, %v2118
    %v2120 = vpop.f32.mrf.mxu0
    %v2121 = vadd.f32 %v2016, %v2120
    %v2122 = vpop.f32.mrf.mxu0
    %v2123 = vadd.f32 %v2018, %v2122
    %2124 = vmatprep.mubr.bf16.mxu0 0
    %2125 = vmatmul.mubr.bf16.gmra.mxu0 %v2074
    %v2126 = vpop.f32.mrf.mxu0
    %v2127 = vadd.f32 %v2022, %v2126
    %v2128 = vpop.f32.mrf.mxu0
    %v2129 = vadd.f32 %v2024, %v2128
    %v2130 = vpop.f32.mrf.mxu0
    %v2131 = vadd.f32 %v2026, %v2130
    %v2132 = vpop.f32.mrf.mxu0
    %v2133 = vadd.f32 %v2028, %v2132
    %2134 = vmatprep.mubr.bf16.mxu0 0
    %2135 = vmatmul.mubr.bf16.gmra.mxu0 %v2077
    %v2136 = vpop.f32.mrf.mxu0
    %v2137 = vadd.f32 %v2032, %v2136
    %v2138 = vpop.f32.mrf.mxu0
    %v2139 = vadd.f32 %v2034, %v2138
    %v2140 = vpop.f32.mrf.mxu0
    %v2141 = vadd.f32 %v2036, %v2140
    %v2142 = vpop.f32.mrf.mxu0
    %v2143 = vadd.f32 %v2038, %v2142
    %2144 = vmatprep.mubr.bf16.mxu0 0
    %2145 = vmatmul.mubr.bf16.gmra.mxu0 %v2080
    %v2146 = vpop.f32.mrf.mxu0
    %v2147 = vadd.f32 %v2042, %v2146
    %v2148 = vpop.f32.mrf.mxu0
    %v2149 = vadd.f32 %v2044, %v2148
    %v2150 = vpop.f32.mrf.mxu0
    %v2151 = vadd.f32 %v2046, %v2150
    %v2152 = vpop.f32.mrf.mxu0
    %v2153 = vadd.f32 %v2048, %v2152
    %2154 = vdwg.mxu0
    %v2155 = vld [vmem:[%s16] sm:$0xff]
    %v2156 = vld [vmem:[%s16 + $0x8] sm:$0xff]
    %v2157 = vld [vmem:[%s16 + $0x10] sm:$0xff]
    %v2158 = vld [vmem:[%s16 + $0x18] sm:$0xff]
    %v2159 = vld [vmem:[%s16 + $0x20] sm:$0xff]
    %v2160 = vld [vmem:[%s16 + $0x28] sm:$0xff]
    %v2161 = vld [vmem:[%s16 + $0x30] sm:$0xff]
    %v2162 = vld [vmem:[%s16 + $0x38] sm:$0xff]
    %2164 = vset.pattern.permute.xlu0 0
    %2165 = vperm.xlu0 %2164, %v2155
    %v2166 = vpop.permute.xlu0 %2165
    %2169 = vset.pattern.permute.xlu0 0
    %2170 = vperm.xlu0 %2169, %v2156
    %v2171 = vpop.permute.xlu0 %2170
    %2174 = vset.pattern.permute.xlu0 0
    %2175 = vperm.xlu0 %2174, %v2157
    %v2176 = vpop.permute.xlu0 %2175
    %2179 = vset.pattern.permute.xlu0 0
    %2180 = vperm.xlu0 %2179, %v2158
    %v2181 = vpop.permute.xlu0 %2180
    %2184 = vset.pattern.permute.xlu0 0
    %2185 = vperm.xlu0 %2184, %v2159
    %v2186 = vpop.permute.xlu0 %2185
    %2189 = vset.pattern.permute.xlu0 0
    %2190 = vperm.xlu0 %2189, %v2160
    %v2191 = vpop.permute.xlu0 %2190
    %2194 = vset.pattern.permute.xlu0 0
    %2195 = vperm.xlu0 %2194, %v2161
    %v2196 = vpop.permute.xlu0 %2195
    %2199 = vset.pattern.permute.xlu0 0
    %2200 = vperm.xlu0 %2199, %v2162
    %v2201 = vpop.permute.xlu0 %2200
    %v2203 = vadd.f32 %v2117, %v2166
    %v2204 = vadd.f32 %v2119, %v2166
    %v2205 = vadd.f32 %v2121, %v2171
    %v2206 = vadd.f32 %v2123, %v2171
    %v2207 = vadd.f32 %v2127, %v2176
    %v2208 = vadd.f32 %v2129, %v2176
    %v2209 = vadd.f32 %v2131, %v2181
    %v2210 = vadd.f32 %v2133, %v2181
    %v2211 = vadd.f32 %v2137, %v2186
    %v2212 = vadd.f32 %v2139, %v2186
    %v2213 = vadd.f32 %v2141, %v2191
    %v2214 = vadd.f32 %v2143, %v2191
    %v2215 = vadd.f32 %v2147, %v2196
    %v2216 = vadd.f32 %v2149, %v2196
    %v2217 = vadd.f32 %v2151, %v2201
    %v2218 = vadd.f32 %v2153, %v2201
    %v2219 = vmax.f32 %v2203, 0.0
    %v2220 = vmax.f32 %v2204, 0.0
    %v2221 = vmax.f32 %v2205, 0.0
    %v2222 = vmax.f32 %v2206, 0.0
    %v2223 = vmax.f32 %v2207, 0.0
    %v2224 = vmax.f32 %v2208, 0.0
    %v2225 = vmax.f32 %v2209, 0.0
    %v2226 = vmax.f32 %v2210, 0.0
    %v2227 = vmax.f32 %v2211, 0.0
    %v2228 = vmax.f32 %v2212, 0.0
    %v2229 = vmax.f32 %v2213, 0.0
    %v2230 = vmax.f32 %v2214, 0.0
    %v2231 = vmax.f32 %v2215, 0.0
    %v2232 = vmax.f32 %v2216, 0.0
    %v2233 = vmax.f32 %v2217, 0.0
    %v2234 = vmax.f32 %v2218, 0.0
    %v2235 = vpack.c.bf16 %v2221, %v2219
    %v2236 = vpack.c.bf16 %v2222, %v2220
    %v2237 = vpack.c.bf16 %v2225, %v2223
    %v2238 = vpack.c.bf16 %v2226, %v2224
    %v2239 = vpack.c.bf16 %v2229, %v2227
    %v2240 = vpack.c.bf16 %v2230, %v2228
    %v2241 = vpack.c.bf16 %v2233, %v2231
    %v2242 = vpack.c.bf16 %v2234, %v2232
    %v2243 = vld [vmem:[%s17] sm:$0x3]
    %v2244 = vld [vmem:[%s18] sm:$0xf]
    %2246 = vset.pattern.permute.xlu0 0
    %2247 = vperm.xlu0 %2246, %v2244
    %v2248 = vpop.permute.xlu0 %2247
    %v2251 = vsel %vm483, %v2243, 0
    %2253 = vmatprep.subr.bf16.mxu0 0
    %2254 = vmatpush1.bf16.msra.mxu0 0
    %2255 = vmatprep.subr.bf16.mxu0 0
    %2256 = vmatpush1.bf16.msra.mxu0 0
    %2257 = vmatprep.subr.bf16.mxu0 0
    %2258 = vmatpush1.bf16.msra.mxu0 0
    %2259 = vmatprep.subr.bf16.mxu0 0
    %2260 = vmatpush1.bf16.msra.mxu0 0
    %2261 = vmatprep.subr.bf16.mxu0 %v2242
    %2262 = vmatpush1.bf16.msra.mxu0 %v2241
    %2263 = vmatprep.subr.bf16.mxu0 %v2240
    %2264 = vmatpush1.bf16.msra.mxu0 %v2239
    %2265 = vmatprep.subr.bf16.mxu0 %v2238
    %2266 = vmatpush1.bf16.msra.mxu0 %v2237
    %2267 = vmatprep.subr.bf16.mxu0 %v2236
    %2268 = vmatpush1.bf16.msra.mxu0 %v2235
    %2269 = vmatprep.subr.bf16.mxu0 0
    %2270 = vmatpush2.bf16.msra.mxu0 0
    %2271 = vmatprep.subr.bf16.mxu0 0
    %2272 = vmatpush2.bf16.msra.mxu0 0
    %2273 = vmatprep.subr.bf16.mxu0 0
    %2274 = vmatpush2.bf16.msra.mxu0 0
    %2275 = vmatprep.subr.bf16.mxu0 0
    %2276 = vmatpush2.bf16.msra.mxu0 0
    %2277 = vmatprep.subr.bf16.mxu0 0
    %2278 = vmatpush2.bf16.msra.mxu0 0
    %2279 = vmatprep.subr.bf16.mxu0 0
    %2280 = vmatpush2.bf16.msra.mxu0 0
    %2281 = vmatprep.subr.bf16.mxu0 0
    %2282 = vmatpush2.bf16.msra.mxu0 0
    %2283 = vmatprep.subr.bf16.mxu0 0
    %2284 = vmatpush2.bf16.msra.mxu0 0
    %2285 = vmatprep.mubr.bf16.mxu0 0
    %2286 = vmatmul.mubr.bf16.gmra.mxu0 %v2251
    %v2287 = vpop.f32.mrf.mxu0
    %v2288 = vadd.f32 %v2248, %v2287
    %v2289 = vpop.f32.mrf.mxu0
    %v2290 = vadd.f32 %v2248, %v2289
    %v2291 = vpop.f32.mrf.mxu0
    %v2292 = vpop.f32.mrf.mxu0
    %2293 = vdwg.mxu0
    %v2294 = vmax.f32 %v2288, 0.0
    %v2295 = vmax.f32 %v2290, 0.0
    %v2296 = vstv %s84
    %v2297 = vmul.f32 %v2296, %v2294
    %v2298 = vmul.f32 %v2296, %v2295
    %v2299 = vadd.f32 %v2297, %v132
    %v2300 = vadd.f32 %v2298, %v134
    %v2301 = vld [vmem:[%s19] sm:$0x3]
    %v2302 = vpack.c.bf16 %v2299, %v2299
    %v2303 = vpack.c.bf16 %v2300, %v2300
    %v2305 = vsel %vm214, %v2301, 0
    %v2308 = vsel %vm227, %v2302, 0
    %v2311 = vsel %vm227, %v2303, 0
    %2313 = vmatprep.subr.bf16.mxu0 0
    %2314 = vmatpush1.bf16.msra.mxu0 0
    %2315 = vmatprep.subr.bf16.mxu0 0
    %2316 = vmatpush1.bf16.msra.mxu0 0
    %2317 = vmatprep.subr.bf16.mxu0 0
    %2318 = vmatpush1.bf16.msra.mxu0 0
    %2319 = vmatprep.subr.bf16.mxu0 0
    %2320 = vmatpush1.bf16.msra.mxu0 0
    %2321 = vmatprep.subr.bf16.mxu0 0
    %2322 = vmatpush1.bf16.msra.mxu0 0
    %2323 = vmatprep.subr.bf16.mxu0 0
    %2324 = vmatpush1.bf16.msra.mxu0 0
    %2325 = vmatprep.subr.bf16.mxu0 0
    %2326 = vmatpush1.bf16.msra.mxu0 0
    %2327 = vmatprep.subr.bf16.mxu0 %v2311
    %2328 = vmatpush1.bf16.msra.mxu0 %v2308
    %2329 = vmatprep.subr.bf16.mxu0 0
    %2330 = vmatpush2.bf16.msra.mxu0 0
    %2331 = vmatprep.subr.bf16.mxu0 0
    %2332 = vmatpush2.bf16.msra.mxu0 0
    %2333 = vmatprep.subr.bf16.mxu0 0
    %2334 = vmatpush2.bf16.msra.mxu0 0
    %2335 = vmatprep.subr.bf16.mxu0 0
    %2336 = vmatpush2.bf16.msra.mxu0 0
    %2337 = vmatprep.subr.bf16.mxu0 0
    %2338 = vmatpush2.bf16.msra.mxu0 0
    %2339 = vmatprep.subr.bf16.mxu0 0
    %2340 = vmatpush2.bf16.msra.mxu0 0
    %2341 = vmatprep.subr.bf16.mxu0 0
    %2342 = vmatpush2.bf16.msra.mxu0 0
    %2343 = vmatprep.subr.bf16.mxu0 0
    %2344 = vmatpush2.bf16.msra.mxu0 0
    %2345 = vmatprep.mubr.bf16.mxu0 0
    %2346 = vmatmul.mubr.bf16.gmra.mxu0 %v2305
    %v2347 = vpop.f32.mrf.mxu0
    %v2348 = vadd.f32 0.0, %v2347
    %v2349 = vpop.f32.mrf.mxu0
    %v2350 = vadd.f32 0.0, %v2349
    %v2351 = vpop.f32.mrf.mxu0
    %v2352 = vpop.f32.mrf.mxu0
    %2353 = vdwg.mxu0
    %v2354 = vmax.f32 %v2348, 0.0
    %v2355 = vmax.f32 %v2350, 0.0
    %v2358 = vcombine.low %v2354, %v2355
    %2360 = vst [vmem:[#allocation3] sm:$0xff] %v2358
    %v2363 = vcombine.low %v2294, %v2295
    %2365 = vst [vmem:[#allocation5] sm:$0xff] %v2363
    // Predicated region
    $region86: #{tpu_custom_call.1} parent=1 // pred_check
      _
    $region87: #{tpu_custom_call.1} parent=1 // pred_check_branch
      %2367 = sbr.rel (0) target = $region89
    $region88: #{tpu_custom_call.1} parent=1 // pred_region
      %s2369 = ssub.s32 128, 128
      %2370 = vsyncadd [#allocation4], %s2369
      %s2372 = sshll.u32 [#allocation3], 4
      %s2373 = int_to_ptr.vmem [resolvable:$true] %s2372
      %2375 = dma.vmem_to_hbm [thread:$0]  %s2373, 128, %s21, [#allocation4]
    $region89: #{tpu_custom_call.1} parent=1 // pred_fallthru
      _
    // Predicated region
    $region90: #{tpu_custom_call.1} parent=1 // pred_check
      _
    $region91: #{tpu_custom_call.1} parent=1 // pred_check_branch
      %2377 = sbr.rel (0) target = $region93
    $region92: #{tpu_custom_call.1} parent=1 // pred_region
      %s2379 = ssub.s32 128, 128
      %2380 = vsyncadd [#allocation6], %s2379
      %s2382 = sshll.u32 [#allocation5], 4
      %s2383 = int_to_ptr.vmem [resolvable:$true] %s2382
      %2385 = dma.vmem_to_hbm [thread:$0]  %s2383, 128, %s22, [#allocation6]
    $region93: #{tpu_custom_call.1} parent=1 // pred_fallthru
      _
    // Predicated region
    $region94: #{tpu_custom_call.1} parent=1 // pred_check
      _
    $region95: #{tpu_custom_call.1} parent=1 // pred_check_branch
      %2387 = sbr.rel (0) target = $region97
    $region96: #{tpu_custom_call.1} parent=1 // pred_region
      %2388 = dma.done [#allocation4], 128
    $region97: #{tpu_custom_call.1} parent=1 // pred_fallthru
      _
    // Predicated region
    $region98: #{tpu_custom_call.1} parent=1 // pred_check
      _
    $region99: #{tpu_custom_call.1} parent=1 // pred_check_branch
      %2390 = sbr.rel (0) target = $region101
    $region100: #{tpu_custom_call.1} parent=1 // pred_region
      %2391 = dma.done [#allocation6], 128
    $region101: #{tpu_custom_call.1} parent=1 // pred_fallthru
      _
    %2392 = vsyncpa [#allocation4], 1
    %2393 = vsyncpa [#allocation6], 1

</llo_original>
